<compile_context>
chip_gen: v7x
topology: tpu7x:2x2x1
jax: 0.10.0
libtpu: 0.0.40
codegen_flags: <defaults>
</compile_context>

<pallas_src>
import jax
import jax.numpy as jnp
from jax import lax
from jax.experimental import pallas as pl
from jax.experimental.pallas import tpu as pltpu

BN_EPS = 1e-5
WEIGHT_DTYPE = jnp.bfloat16        # MXU-native on v6e/v7x; f32 accumulation kept


def _round_up(x, m):
    return ((x + m - 1) // m) * m


# ----------------------------------------------------------------------------
# Pallas kernel
# ----------------------------------------------------------------------------
def _make_mmoe_kernel(task_num, expert_num, bottom_mlp_dims, tower_mlp_dims,
                      eb0_pad):
    T, E = task_num, expert_num
    n_expert_layers = len(bottom_mlp_dims)
    n_tower_layers = len(tower_mlp_dims)
    TE = T * E

    def kernel(*refs):
        out_ref = refs[-1]                          # (T, TB) lane-dense output
        it = iter(refs[:-1])
        emb = next(it)[...]                         # (TB, emb_dim) bf16

        # --- fused layer 0: [expert layer-0 (padded to 128 lanes) | gates] ---
        W0 = next(it)[...]                          # (emb_dim, eb0_pad + T*E) bf16
        b0 = next(it)[...]                          # (1, eb0_pad + T*E) f32
        z = jnp.dot(emb, W0, preferred_element_type=jnp.float32) + b0
        h = jnp.maximum(z[:, :eb0_pad], 0.0)        # (TB, eb0_pad) f32
        gate_logits = z[:, eb0_pad:eb0_pad + TE]    # (TB, T*E) f32  (aligned slice)

        # --- remaining expert layers: block-diagonal across experts ----------
        for _ in range(n_expert_layers - 1):
            W = next(it)[...]                       # bf16 block-diag
            b = next(it)[...]                       # f32
            h = jnp.maximum(
                jnp.dot(h.astype(W.dtype), W,
                        preferred_element_type=jnp.float32) + b, 0.0)
        # h: (TB, E*bottom[-1]) f32

        # --- vectorized per-task softmax gate + expert mixing ----------------
        # grouping / replication / segment-sums are constant 0/1 matrices that
        # ride the MXU (which has slack here), keeping VALU/XLU free.
        S      = next(it)[...]                      # (T*E, T)      group-sum
        Srep   = next(it)[...]                      # (T, T*E)      denom -> group
        R_rep  = next(it)[...]                      # (T*E, T*E*D)  gate -> D lanes
        R_tile = next(it)[...]                      # (h_w, T*E*D)  experts tiled/task

        m = jnp.max(gate_logits, axis=-1, keepdims=True)   # shift-invariant per group
        e = jnp.exp(gate_logits - m)                        # (TB, T*E) f32 (EUP)
        denom = jnp.dot(e.astype(S.dtype), S,
                        preferred_element_type=jnp.float32)             # (TB, T)
        inv = pl.reciprocal(denom, approx=True)                          # EUP, ~free
        g = e * jnp.dot(inv.astype(Srep.dtype), Srep,
                        preferred_element_type=jnp.float32)             # (TB, T*E)
        g_rep = jnp.dot(g.astype(R_rep.dtype), R_rep,
                        preferred_element_type=jnp.float32)             # (TB, T*E*D)
        h_til = jnp.dot(h.astype(R_tile.dtype), R_tile,
                        preferred_element_type=jnp.float32)             # (TB, T*E*D)
        hh = g_rep * h_til                                               # one VPU mul
        # the per-(task,expert) -> per-task segment-sum is pre-folded into the
        # first post-mix weight below (one fewer MXU pass).

        # --- towers: block-diagonal across tasks ------------------------------
        for _ in range(n_tower_layers):
            W = next(it)[...]
            b = next(it)[...]
            hh = jnp.maximum(
                jnp.dot(hh.astype(W.dtype), W,
                        preferred_element_type=jnp.float32) + b, 0.0)

        # --- final per-task Linear(->1), computed transposed ('tk,bk->tb') so
        # the (T, TB) output store is lane-dense (no masked 2-lane writes).
        WfT = next(it)[...]                         # (T, K) bf16
        bfT = next(it)[...]                         # (T, 1) f32
        logits_t = lax.dot_general(
            WfT, hh.astype(WfT.dtype),
            dimension_numbers=(((1,), (1,)), ((), ())),
            preferred_element_type=jnp.float32)     # (T, TB)
        out_ref[...] = jax.nn.sigmoid(logits_t + bfT)

    return kernel


def mmoe_forward(emb, packed_params, *, task_num, expert_num,
                 bottom_mlp_dims, tower_mlp_dims, eb0_pad, tile_batch=None):
    """emb: (B, embed_output_dim) pre-concatenated [categorical_emb | numerical_emb]."""
    B, emb_dim = emb.shape

    if tile_batch is None:
        tile_batch = 1024          # production default; amortizes ~0.35us/step overhead
    # transposed lane-dense output requires the batch tile to be a multiple of
    # 128 lanes (or to cover the whole padded batch in a single step).
    tb = _round_up(min(tile_batch, B), 128)
    B_pad = _round_up(B, tb)
    # NOTE(v7x): for large B pick tb so that B_pad // tb >= 2 (and even); the
    # "parallel" batch axis is what shards work across the two TensorCores.

    emb = emb.astype(jnp.bfloat16)                 # matmul operand dtype; halves input DMA
    if B_pad != B:
        emb = jnp.pad(emb, ((0, B_pad - B), (0, 0)))

    kernel = _make_mmoe_kernel(task_num, expert_num, bottom_mlp_dims,
                               tower_mlp_dims, eb0_pad)

    in_specs = [pl.BlockSpec((tb, emb_dim), lambda i: (i, 0))]
    # weights / constants: full-extent blocks, constant index_map -> VMEM-resident
    in_specs += [pl.BlockSpec(p.shape, lambda i: (0, 0)) for p in packed_params]

    out = pl.pallas_call(
        kernel,
        out_shape=jax.ShapeDtypeStruct((task_num, B_pad), jnp.float32),
        grid=(B_pad // tb,),
        in_specs=in_specs,
        out_specs=pl.BlockSpec((task_num, tb), lambda i: (0, i)),
        compiler_params=pltpu.CompilerParams(
            dimension_semantics=("parallel",),
            # raises v5e's 16 MiB scoped default; matches v6e/v7x default (32 MiB)
            vmem_limit_bytes=32 * 1024 * 1024),
    )(emb, *packed_params)

    return [out[t, :B] for t in range(task_num)]


# ----------------------------------------------------------------------------
# Deterministic parameter construction (synthetic, eval-mode semantics)
# ----------------------------------------------------------------------------
def _glorot(key, shape):
    fan_in, fan_out = shape
    lim = jnp.sqrt(6.0 / (fan_in + fan_out))
    return jax.random.uniform(key, shape, jnp.float32, -lim, lim)


def _bias(key, dim, fan_in):
    lim = 1.0 / jnp.sqrt(jnp.float32(fan_in))
    return jax.random.uniform(key, (1, dim), jnp.float32, -lim, lim)


def _fold_bn(W, b, dim):
    # eval-mode BatchNorm1d with default stats: gamma=1, beta=0, mean=0, var=1.
    # Folded identically into both the packed kernel weights and the reference
    # (both consume these folded W, b), matching PyTorch eval semantics incl. eps.
    gamma = jnp.ones((dim,), jnp.float32)
    beta = jnp.zeros((dim,), jnp.float32)
    mean = jnp.zeros((dim,), jnp.float32)
    var = jnp.ones((dim,), jnp.float32)
    scale = gamma / jnp.sqrt(var + BN_EPS)
    return W * scale[None, :], (b - mean[None, :]) * scale[None, :] + beta[None, :]


def init_params(key, field_dims, numerical_num, embed_dim,
                bottom_mlp_dims, tower_mlp_dims, task_num, expert_num):
    cat_dim = len(field_dims) * embed_dim
    emb_out_dim = cat_dim + embed_dim
    keys = iter(jax.random.split(key, 256))

    emb_table = _glorot(next(keys), (sum(field_dims), embed_dim))

    sp = {}
    sp['num_W'] = _glorot(next(keys), (numerical_num, embed_dim))
    sp['num_b'] = _bias(next(keys), embed_dim, numerical_num)

    sp['gate'] = []
    for _ in range(task_num):
        W = _glorot(next(keys), (emb_out_dim, expert_num))
        b = _bias(next(keys), expert_num, emb_out_dim)
        sp['gate'].append((W, b))

    sp['expert'] = []
    for _ in range(expert_num):
        layers = []
        in_dim = emb_out_dim
        for d in bottom_mlp_dims:
            W = _glorot(next(keys), (in_dim, d))
            b = _bias(next(keys), d, in_dim)
            W, b = _fold_bn(W, b, d)
            layers.append((W, b))
            in_dim = d
        sp['expert'].append(layers)

    sp['tower'] = []
    for _ in range(task_num):
        layers = []
        in_dim = bottom_mlp_dims[-1]
        for d in tower_mlp_dims:
            W = _glorot(next(keys), (in_dim, d))
            b = _bias(next(keys), d, in_dim)
            W, b = _fold_bn(W, b, d)
            layers.append((W, b))
            in_dim = d
        Wf = _glorot(next(keys), (in_dim, 1))
        bf = _bias(next(keys), 1, in_dim)
        layers.append((Wf, bf))
        sp['tower'].append(layers)

    return emb_table, sp


def _block_diag(mats):
    rows = sum(m.shape[0] for m in mats)
    cols = sum(m.shape[1] for m in mats)
    out = jnp.zeros((rows, cols), mats[0].dtype)
    r = c = 0
    for m in mats:
        out = out.at[r:r + m.shape[0], c:c + m.shape[1]].set(m)
        r += m.shape[0]
        c += m.shape[1]
    return out


def pack_params(sp, bottom_mlp_dims, tower_mlp_dims, task_num, expert_num):
    """Pack per-expert / per-task weights into a few lane-fused bf16 arrays."""
    T, E = task_num, expert_num
    D = bottom_mlp_dims[-1]
    eb0 = E * bottom_mlp_dims[0]
    eb0_pad = _round_up(eb0, 128)              # 128-lane-aligned expert/gate split
    pad = eb0_pad - eb0
    wdt = WEIGHT_DTYPE
    f32 = jnp.float32
    packed = []

    # fused layer 0: [expert layer-0 (all experts) | zero pad | gates (all tasks)]
    W0e = jnp.concatenate([layers[0][0] for layers in sp['expert']], axis=1)
    b0e = jnp.concatenate([layers[0][1] for layers in sp['expert']], axis=1)
    W0g = jnp.concatenate([W for W, _ in sp['gate']], axis=1)
    b0g = jnp.concatenate([b for _, b in sp['gate']], axis=1)
    W0 = jnp.concatenate([W0e, jnp.zeros((W0e.shape[0], pad), f32), W0g], axis=1)
    b0 = jnp.concatenate([b0e, jnp.zeros((1, pad), f32), b0g], axis=1)
    packed += [W0.astype(wdt), b0.astype(f32)]

    # remaining expert layers: block-diagonal across experts; the first one gets
    # extra zero rows for the eb0 -> eb0_pad lane padding of h.
    for li in range(1, len(bottom_mlp_dims)):
        Ws = [layers[li][0] for layers in sp['expert']]
        bs = [layers[li][1] for layers in sp['expert']]
        W = _block_diag(Ws)
        if li == 1 and pad:
            W = jnp.concatenate([W, jnp.zeros((pad, W.shape[1]), f32)], axis=0)
        packed += [W.astype(wdt), jnp.concatenate(bs, axis=1).astype(f32)]

    # constant 0/1 matrices for the vectorized gate softmax + expert mixing
    S = jnp.kron(jnp.eye(T, dtype=f32), jnp.ones((E, 1), f32))            # (T*E, T)
    R_rep = jnp.kron(jnp.eye(T * E, dtype=f32), jnp.ones((1, D), f32))    # (T*E, T*E*D)
    R_tile = jnp.concatenate([jnp.eye(E * D, dtype=f32)] * T, axis=1)     # (E*D, T*E*D)
    h_width = eb0_pad if len(bottom_mlp_dims) == 1 else E * D
    if h_width > E * D:
        R_tile = jnp.concatenate(
            [R_tile, jnp.zeros((h_width - E * D, T * E * D), f32)], axis=0)
    R_sum = jnp.kron(jnp.eye(T, dtype=f32),
                     jnp.kron(jnp.ones((E, 1), f32), jnp.eye(D, dtype=f32)))  # (T*E*D, T*D)
    packed += [S.astype(wdt), S.T.astype(wdt), R_rep.astype(wdt), R_tile.astype(wdt)]

    # tower hidden layers: block-diagonal across tasks; fold the per-task
    # segment-sum R_sum into the first post-mix weight (saves an MXU pass).
    folded = False
    for li in range(len(tower_mlp_dims)):
        Ws = [sp['tower'][t][li][0] for t in range(T)]
        bs = [sp['tower'][t][li][1] for t in range(T)]
        W = _block_diag(Ws)
        if not folded:
            W = R_sum @ W
            folded = True
        packed += [W.astype(wdt), jnp.concatenate(bs, axis=1).astype(f32)]

    # final per-task Linear(->1): stored transposed (T, K) so the kernel can
    # emit a lane-dense (T, TB) output directly via 'tk,bk->tb'.
    Wf = _block_diag([sp['tower'][t][-1][0] for t in range(T)])
    if not folded:
        Wf = R_sum @ Wf
    bf = jnp.concatenate([sp['tower'][t][-1][1] for t in range(T)], axis=1)
    packed += [Wf.T.astype(wdt), bf.T.astype(f32)]
    return packed, eb0_pad


# ----------------------------------------------------------------------------
# Pure-JAX f32 reference (for correctness check)
# ----------------------------------------------------------------------------
def ref_forward(cat_emb, numerical_x, sp, task_num, expert_num):
    num_emb = numerical_x @ sp['num_W'] + sp['num_b']
    emb = jnp.concatenate([cat_emb, num_emb], axis=-1)

    gates = [jax.nn.softmax(emb @ W + b, axis=-1) for W, b in sp['gate']]

    experts = []
    for layers in sp['expert']:
        h = emb
        for W, b in layers:
            h = jnp.maximum(h @ W + b, 0.0)
        experts.append(h)
    fea = jnp.stack(experts, axis=1)                         # (B, E, D)

    outs = []
    for t, layers in enumerate(sp['tower']):
        h = jnp.squeeze(gates[t][:, None, :] @ fea, axis=1)  # torch.bmm equivalent
        for W, b in layers[:-1]:
            h = jnp.maximum(h @ W + b, 0.0)
        Wf, bf = layers[-1]
        outs.append(jax.nn.sigmoid(h @ Wf + bf)[:, 0])
    return outs


# ----------------------------------------------------------------------------
if __name__ == "__main__":
    key = jax.random.PRNGKey(0)

    # model config (small but representative of the module)
    field_dims = (5, 7, 11)        # categorical_field_dims
    numerical_num = 4
    embed_dim = 8
    bottom_mlp_dims = (32, 16)
    tower_mlp_dims = (16, 8)
    task_num = 2
    expert_num = 3
    B = 200                        # pads to 256 -> 2-step batch grid at tb=128

    kp, kc, kn = jax.random.split(key, 3)
    emb_table, sp = init_params(
        kp, field_dims, numerical_num, embed_dim,
        bottom_mlp_dims, tower_mlp_dims, task_num, expert_num)
    packed, eb0_pad = pack_params(
        sp, bottom_mlp_dims, tower_mlp_dims, task_num, expert_num)

    # inputs
    field_keys = jax.random.split(kc, len(field_dims))
    categorical_x = jnp.stack(
        [jax.random.randint(fk, (B,), 0, fd) for fk, fd in zip(field_keys, field_dims)],
        axis=1).astype(jnp.int32)                            # (B, num_fields)
    numerical_x = jax.random.normal(kn, (B, numerical_num), jnp.float32)

    # EmbeddingLayer (gather) + numerical Linear + concat: plain-JAX glue
    offs, acc = [], 0
    for fd in field_dims:
        offs.append(acc)
        acc += fd
    offsets = jnp.array(offs, jnp.int32)
    cat_emb = emb_table[categorical_x + offsets[None, :]].reshape(B, -1)
    num_emb = numerical_x @ sp['num_W'] + sp['num_b']
    emb = jnp.concatenate([cat_emb, num_emb], axis=-1)       # (B, embed_output_dim)

    results = mmoe_forward(
        emb, packed,
        task_num=task_num, expert_num=expert_num,
        bottom_mlp_dims=bottom_mlp_dims, tower_mlp_dims=tower_mlp_dims,
        eb0_pad=eb0_pad, tile_batch=128)
    results = [jax.block_until_ready(r) for r in results]

    expected = ref_forward(cat_emb, numerical_x, sp, task_num, expert_num)
    for got, want in zip(results, expected):
        assert got.shape == (B,)
        # bf16 matmul operands + approx reciprocal -> relaxed (post-sigmoid) tolerance
        assert jnp.allclose(got, jnp.asarray(want), atol=2e-2, rtol=2e-2), (got, want)

    print("KERNEL_OK")
</pallas_src>

<mosaic_0001>
module attributes {stable_mosaic.version = 11 : i64} {
  func.func @kernel(%arg0: i32, %arg1: memref<128x32xbf16, #tpu.memory_space<vmem>>, %arg2: memref<32x134xbf16, #tpu.memory_space<vmem>>, %arg3: memref<1x134xf32, #tpu.memory_space<vmem>>, %arg4: memref<128x48xbf16, #tpu.memory_space<vmem>>, %arg5: memref<1x48xf32, #tpu.memory_space<vmem>>, %arg6: memref<6x2xbf16, #tpu.memory_space<vmem>>, %arg7: memref<2x6xbf16, #tpu.memory_space<vmem>>, %arg8: memref<6x96xbf16, #tpu.memory_space<vmem>>, %arg9: memref<48x96xbf16, #tpu.memory_space<vmem>>, %arg10: memref<96x32xbf16, #tpu.memory_space<vmem>>, %arg11: memref<1x32xf32, #tpu.memory_space<vmem>>, %arg12: memref<32x16xbf16, #tpu.memory_space<vmem>>, %arg13: memref<1x16xf32, #tpu.memory_space<vmem>>, %arg14: memref<2x16xbf16, #tpu.memory_space<vmem>>, %arg15: memref<2x1xf32, #tpu.memory_space<vmem>>, %arg16: memref<2x128xf32, #tpu.memory_space<vmem>>) attributes {dimension_semantics = [#tpu.dimension_semantics<parallel>], iteration_bounds = array<i64: 2>, scalar_prefetch = 0 : i64, scratch_operands = 0 : i64, tpu.core_type = #tpu.core_type<tc>, window_params = [{transform_indices = @transform_0, window_bounds = array<i64: 128, 32>}, {pipeline_mode = #tpu.pipeline_mode<synchronous>, transform_indices = @transform_1, window_bounds = array<i64: 32, 134>}, {pipeline_mode = #tpu.pipeline_mode<synchronous>, transform_indices = @transform_2, window_bounds = array<i64: 1, 134>}, {pipeline_mode = #tpu.pipeline_mode<synchronous>, transform_indices = @transform_3, window_bounds = array<i64: 128, 48>}, {pipeline_mode = #tpu.pipeline_mode<synchronous>, transform_indices = @transform_4, window_bounds = array<i64: 1, 48>}, {pipeline_mode = #tpu.pipeline_mode<synchronous>, transform_indices = @transform_5, window_bounds = array<i64: 6, 2>}, {pipeline_mode = #tpu.pipeline_mode<synchronous>, transform_indices = @transform_6, window_bounds = array<i64: 2, 6>}, {pipeline_mode = #tpu.pipeline_mode<synchronous>, transform_indices = @transform_7, window_bounds = array<i64: 6, 96>}, {pipeline_mode = #tpu.pipeline_mode<synchronous>, transform_indices = @transform_8, window_bounds = array<i64: 48, 96>}, {pipeline_mode = #tpu.pipeline_mode<synchronous>, transform_indices = @transform_9, window_bounds = array<i64: 96, 32>}, {pipeline_mode = #tpu.pipeline_mode<synchronous>, transform_indices = @transform_10, window_bounds = array<i64: 1, 32>}, {pipeline_mode = #tpu.pipeline_mode<synchronous>, transform_indices = @transform_11, window_bounds = array<i64: 32, 16>}, {pipeline_mode = #tpu.pipeline_mode<synchronous>, transform_indices = @transform_12, window_bounds = array<i64: 1, 16>}, {pipeline_mode = #tpu.pipeline_mode<synchronous>, transform_indices = @transform_13, window_bounds = array<i64: 2, 16>}, {pipeline_mode = #tpu.pipeline_mode<synchronous>, transform_indices = @transform_14, window_bounds = array<i64: 2, 1>}, {transform_indices = @transform_15, window_bounds = array<i64: 2, 128>}]} {
    %c0 = arith.constant 0 : index
    %c0_0 = arith.constant 0 : index
    %0 = vector.load %arg1[%c0, %c0_0] : memref<128x32xbf16, #tpu.memory_space<vmem>>, vector<128x32xbf16>
    %c0_1 = arith.constant 0 : index
    %c0_2 = arith.constant 0 : index
    %1 = vector.load %arg2[%c0_1, %c0_2] : memref<32x134xbf16, #tpu.memory_space<vmem>>, vector<32x134xbf16>
    %c0_3 = arith.constant 0 : index
    %c0_4 = arith.constant 0 : index
    %2 = vector.load %arg3[%c0_3, %c0_4] : memref<1x134xf32, #tpu.memory_space<vmem>>, vector<1x134xf32>
    %cst = arith.constant dense<0.000000e+00> : vector<128x134xf32>
    %3 = tpu.matmul %0, %1, %cst {dimension_numbers = #tpu.dot_dimension_numbers<[1], [0], [0], [1], [0, 0, 1, 1], [], []>} : vector<128x32xbf16>, vector<32x134xbf16>, vector<128x134xf32> -> vector<128x134xf32>
    %4 = vector.broadcast %2 : vector<1x134xf32> to vector<128x134xf32>
    %5 = arith.addf %3, %4 : vector<128x134xf32>
    %6 = vector.extract_strided_slice %5 {offsets = [0, 0], sizes = [128, 128], strides = [1, 1]} : vector<128x134xf32> to vector<128x128xf32>
    %cst_5 = arith.constant 0.000000e+00 : f32
    %7 = vector.broadcast %cst_5 : f32 to vector<128x128xf32>
    %8 = arith.maximumf %6, %7 : vector<128x128xf32>
    %9 = vector.extract_strided_slice %5 {offsets = [0, 128], sizes = [128, 6], strides = [1, 1]} : vector<128x134xf32> to vector<128x6xf32>
    %c0_6 = arith.constant 0 : index
    %c0_7 = arith.constant 0 : index
    %10 = vector.load %arg4[%c0_6, %c0_7] : memref<128x48xbf16, #tpu.memory_space<vmem>>, vector<128x48xbf16>
    %c0_8 = arith.constant 0 : index
    %c0_9 = arith.constant 0 : index
    %11 = vector.load %arg5[%c0_8, %c0_9] : memref<1x48xf32, #tpu.memory_space<vmem>>, vector<1x48xf32>
    %12 = arith.truncf %8 : vector<128x128xf32> to vector<128x128xbf16>
    %cst_10 = arith.constant dense<0.000000e+00> : vector<128x48xf32>
    %13 = tpu.matmul %12, %10, %cst_10 {dimension_numbers = #tpu.dot_dimension_numbers<[1], [0], [0], [1], [0, 0, 1, 1], [], []>} : vector<128x128xbf16>, vector<128x48xbf16>, vector<128x48xf32> -> vector<128x48xf32>
    %14 = vector.broadcast %11 : vector<1x48xf32> to vector<128x48xf32>
    %15 = arith.addf %13, %14 : vector<128x48xf32>
    %cst_11 = arith.constant 0.000000e+00 : f32
    %16 = vector.broadcast %cst_11 : f32 to vector<128x48xf32>
    %17 = arith.maximumf %15, %16 : vector<128x48xf32>
    %c0_12 = arith.constant 0 : index
    %c0_13 = arith.constant 0 : index
    %18 = vector.load %arg6[%c0_12, %c0_13] : memref<6x2xbf16, #tpu.memory_space<vmem>>, vector<6x2xbf16>
    %c0_14 = arith.constant 0 : index
    %c0_15 = arith.constant 0 : index
    %19 = vector.load %arg7[%c0_14, %c0_15] : memref<2x6xbf16, #tpu.memory_space<vmem>>, vector<2x6xbf16>
    %c0_16 = arith.constant 0 : index
    %c0_17 = arith.constant 0 : index
    %20 = vector.load %arg8[%c0_16, %c0_17] : memref<6x96xbf16, #tpu.memory_space<vmem>>, vector<6x96xbf16>
    %c0_18 = arith.constant 0 : index
    %c0_19 = arith.constant 0 : index
    %21 = vector.load %arg9[%c0_18, %c0_19] : memref<48x96xbf16, #tpu.memory_space<vmem>>, vector<48x96xbf16>
    %cst_20 = arith.constant dense<0xFF800000> : vector<128xf32>
    %22 = vector.multi_reduction <maximumf>, %9, %cst_20 [1] : vector<128x6xf32> to vector<128xf32>
    %23 = vector.shape_cast %22 : vector<128xf32> to vector<128x1xf32>
    %24 = vector.broadcast %23 : vector<128x1xf32> to vector<128x6xf32>
    %25 = arith.subf %9, %24 : vector<128x6xf32>
    %26 = math.exp %25 : vector<128x6xf32>
    %27 = arith.truncf %26 : vector<128x6xf32> to vector<128x6xbf16>
    %cst_21 = arith.constant dense<0.000000e+00> : vector<128x2xf32>
    %28 = tpu.matmul %27, %18, %cst_21 {dimension_numbers = #tpu.dot_dimension_numbers<[1], [0], [0], [1], [0, 0, 1, 1], [], []>} : vector<128x6xbf16>, vector<6x2xbf16>, vector<128x2xf32> -> vector<128x2xf32>
    %29 = tpu.reciprocal %28 {approx = true} : vector<128x2xf32> -> vector<128x2xf32>
    %30 = arith.truncf %29 : vector<128x2xf32> to vector<128x2xbf16>
    %cst_22 = arith.constant dense<0.000000e+00> : vector<128x6xf32>
    %31 = tpu.matmul %30, %19, %cst_22 {dimension_numbers = #tpu.dot_dimension_numbers<[1], [0], [0], [1], [0, 0, 1, 1], [], []>} : vector<128x2xbf16>, vector<2x6xbf16>, vector<128x6xf32> -> vector<128x6xf32>
    %32 = arith.mulf %26, %31 : vector<128x6xf32>
    %33 = arith.truncf %32 : vector<128x6xf32> to vector<128x6xbf16>
    %cst_23 = arith.constant dense<0.000000e+00> : vector<128x96xf32>
    %34 = tpu.matmul %33, %20, %cst_23 {dimension_numbers = #tpu.dot_dimension_numbers<[1], [0], [0], [1], [0, 0, 1, 1], [], []>} : vector<128x6xbf16>, vector<6x96xbf16>, vector<128x96xf32> -> vector<128x96xf32>
    %35 = arith.truncf %17 : vector<128x48xf32> to vector<128x48xbf16>
    %cst_24 = arith.constant dense<0.000000e+00> : vector<128x96xf32>
    %36 = tpu.matmul %35, %21, %cst_24 {dimension_numbers = #tpu.dot_dimension_numbers<[1], [0], [0], [1], [0, 0, 1, 1], [], []>} : vector<128x48xbf16>, vector<48x96xbf16>, vector<128x96xf32> -> vector<128x96xf32>
    %37 = arith.mulf %34, %36 : vector<128x96xf32>
    %c0_25 = arith.constant 0 : index
    %c0_26 = arith.constant 0 : index
    %38 = vector.load %arg10[%c0_25, %c0_26] : memref<96x32xbf16, #tpu.memory_space<vmem>>, vector<96x32xbf16>
    %c0_27 = arith.constant 0 : index
    %c0_28 = arith.constant 0 : index
    %39 = vector.load %arg11[%c0_27, %c0_28] : memref<1x32xf32, #tpu.memory_space<vmem>>, vector<1x32xf32>
    %40 = arith.truncf %37 : vector<128x96xf32> to vector<128x96xbf16>
    %cst_29 = arith.constant dense<0.000000e+00> : vector<128x32xf32>
    %41 = tpu.matmul %40, %38, %cst_29 {dimension_numbers = #tpu.dot_dimension_numbers<[1], [0], [0], [1], [0, 0, 1, 1], [], []>} : vector<128x96xbf16>, vector<96x32xbf16>, vector<128x32xf32> -> vector<128x32xf32>
    %42 = vector.broadcast %39 : vector<1x32xf32> to vector<128x32xf32>
    %43 = arith.addf %41, %42 : vector<128x32xf32>
    %cst_30 = arith.constant 0.000000e+00 : f32
    %44 = vector.broadcast %cst_30 : f32 to vector<128x32xf32>
    %45 = arith.maximumf %43, %44 : vector<128x32xf32>
    %c0_31 = arith.constant 0 : index
    %c0_32 = arith.constant 0 : index
    %46 = vector.load %arg12[%c0_31, %c0_32] : memref<32x16xbf16, #tpu.memory_space<vmem>>, vector<32x16xbf16>
    %c0_33 = arith.constant 0 : index
    %c0_34 = arith.constant 0 : index
    %47 = vector.load %arg13[%c0_33, %c0_34] : memref<1x16xf32, #tpu.memory_space<vmem>>, vector<1x16xf32>
    %48 = arith.truncf %45 : vector<128x32xf32> to vector<128x32xbf16>
    %cst_35 = arith.constant dense<0.000000e+00> : vector<128x16xf32>
    %49 = tpu.matmul %48, %46, %cst_35 {dimension_numbers = #tpu.dot_dimension_numbers<[1], [0], [0], [1], [0, 0, 1, 1], [], []>} : vector<128x32xbf16>, vector<32x16xbf16>, vector<128x16xf32> -> vector<128x16xf32>
    %50 = vector.broadcast %47 : vector<1x16xf32> to vector<128x16xf32>
    %51 = arith.addf %49, %50 : vector<128x16xf32>
    %cst_36 = arith.constant 0.000000e+00 : f32
    %52 = vector.broadcast %cst_36 : f32 to vector<128x16xf32>
    %53 = arith.maximumf %51, %52 : vector<128x16xf32>
    %c0_37 = arith.constant 0 : index
    %c0_38 = arith.constant 0 : index
    %54 = vector.load %arg14[%c0_37, %c0_38] : memref<2x16xbf16, #tpu.memory_space<vmem>>, vector<2x16xbf16>
    %c0_39 = arith.constant 0 : index
    %c0_40 = arith.constant 0 : index
    %55 = vector.load %arg15[%c0_39, %c0_40] : memref<2x1xf32, #tpu.memory_space<vmem>>, vector<2x1xf32>
    %56 = arith.truncf %53 : vector<128x16xf32> to vector<128x16xbf16>
    %cst_41 = arith.constant dense<0.000000e+00> : vector<2x128xf32>
    %57 = tpu.matmul %54, %56, %cst_41 {dimension_numbers = #tpu.dot_dimension_numbers<[1], [1], [0], [0], [0, 0, 1, 0], [], []>} : vector<2x16xbf16>, vector<128x16xbf16>, vector<2x128xf32> -> vector<2x128xf32>
    %58 = vector.broadcast %55 : vector<2x1xf32> to vector<2x128xf32>
    %59 = arith.addf %57, %58 : vector<2x128xf32>
    %60 = arith.negf %59 : vector<2x128xf32>
    %61 = math.exp %60 : vector<2x128xf32>
    %cst_42 = arith.constant 1.000000e+00 : f32
    %62 = vector.broadcast %cst_42 : f32 to vector<2x128xf32>
    %63 = arith.addf %62, %61 : vector<2x128xf32>
    %64 = arith.divf %62, %63 : vector<2x128xf32>
    %c0_43 = arith.constant 0 : index
    %c0_44 = arith.constant 0 : index
    %65 = vector.load %arg16[%c0_43, %c0_44] : memref<2x128xf32, #tpu.memory_space<vmem>>, vector<2x128xf32>
    tpu.vector_store %arg16[%c0_43, %c0_44], %64 {strides = array<i32>} : memref<2x128xf32, #tpu.memory_space<vmem>>, vector<2x128xf32>,
    return
  }
  func.func @transform_0(%arg0: i32) -> (i32, i32) {
    %c0_i32 = arith.constant 0 : i32
    %c0_i32_0 = arith.constant 0 : i32
    return %arg0, %c0_i32 : i32, i32
  }
  func.func @transform_1(%arg0: i32) -> (i32, i32) {
    %c0_i32 = arith.constant 0 : i32
    %c0_i32_0 = arith.constant 0 : i32
    %c0_i32_1 = arith.constant 0 : i32
    return %c0_i32, %c0_i32_0 : i32, i32
  }
  func.func @transform_2(%arg0: i32) -> (i32, i32) {
    %c0_i32 = arith.constant 0 : i32
    %c0_i32_0 = arith.constant 0 : i32
    %c0_i32_1 = arith.constant 0 : i32
    return %c0_i32, %c0_i32_0 : i32, i32
  }
  func.func @transform_3(%arg0: i32) -> (i32, i32) {
    %c0_i32 = arith.constant 0 : i32
    %c0_i32_0 = arith.constant 0 : i32
    %c0_i32_1 = arith.constant 0 : i32
    return %c0_i32, %c0_i32_0 : i32, i32
  }
  func.func @transform_4(%arg0: i32) -> (i32, i32) {
    %c0_i32 = arith.constant 0 : i32
    %c0_i32_0 = arith.constant 0 : i32
    %c0_i32_1 = arith.constant 0 : i32
    return %c0_i32, %c0_i32_0 : i32, i32
  }
  func.func @transform_5(%arg0: i32) -> (i32, i32) {
    %c0_i32 = arith.constant 0 : i32
    %c0_i32_0 = arith.constant 0 : i32
    %c0_i32_1 = arith.constant 0 : i32
    return %c0_i32, %c0_i32_0 : i32, i32
  }
  func.func @transform_6(%arg0: i32) -> (i32, i32) {
    %c0_i32 = arith.constant 0 : i32
    %c0_i32_0 = arith.constant 0 : i32
    %c0_i32_1 = arith.constant 0 : i32
    return %c0_i32, %c0_i32_0 : i32, i32
  }
  func.func @transform_7(%arg0: i32) -> (i32, i32) {
    %c0_i32 = arith.constant 0 : i32
    %c0_i32_0 = arith.constant 0 : i32
    %c0_i32_1 = arith.constant 0 : i32
    return %c0_i32, %c0_i32_0 : i32, i32
  }
  func.func @transform_8(%arg0: i32) -> (i32, i32) {
    %c0_i32 = arith.constant 0 : i32
    %c0_i32_0 = arith.constant 0 : i32
    %c0_i32_1 = arith.constant 0 : i32
    return %c0_i32, %c0_i32_0 : i32, i32
  }
  func.func @transform_9(%arg0: i32) -> (i32, i32) {
    %c0_i32 = arith.constant 0 : i32
    %c0_i32_0 = arith.constant 0 : i32
    %c0_i32_1 = arith.constant 0 : i32
    return %c0_i32, %c0_i32_0 : i32, i32
  }
  func.func @transform_10(%arg0: i32) -> (i32, i32) {
    %c0_i32 = arith.constant 0 : i32
    %c0_i32_0 = arith.constant 0 : i32
    %c0_i32_1 = arith.constant 0 : i32
    return %c0_i32, %c0_i32_0 : i32, i32
  }
  func.func @transform_11(%arg0: i32) -> (i32, i32) {
    %c0_i32 = arith.constant 0 : i32
    %c0_i32_0 = arith.constant 0 : i32
    %c0_i32_1 = arith.constant 0 : i32
    return %c0_i32, %c0_i32_0 : i32, i32
  }
  func.func @transform_12(%arg0: i32) -> (i32, i32) {
    %c0_i32 = arith.constant 0 : i32
    %c0_i32_0 = arith.constant 0 : i32
    %c0_i32_1 = arith.constant 0 : i32
    return %c0_i32, %c0_i32_0 : i32, i32
  }
  func.func @transform_13(%arg0: i32) -> (i32, i32) {
    %c0_i32 = arith.constant 0 : i32
    %c0_i32_0 = arith.constant 0 : i32
    %c0_i32_1 = arith.constant 0 : i32
    return %c0_i32, %c0_i32_0 : i32, i32
  }
  func.func @transform_14(%arg0: i32) -> (i32, i32) {
    %c0_i32 = arith.constant 0 : i32
    %c0_i32_0 = arith.constant 0 : i32
    %c0_i32_1 = arith.constant 0 : i32
    return %c0_i32, %c0_i32_0 : i32, i32
  }
  func.func @transform_15(%arg0: i32) -> (i32, i32) {
    %c0_i32 = arith.constant 0 : i32
    %c0_i32_0 = arith.constant 0 : i32
    return %c0_i32, %arg0 : i32, i32
  }
}

</mosaic_0001>

<llo_original>
// kernel: tpu_custom_call.1
$region0: #{tpu_custom_call.1}
  #allocation0 [shape = 'u32[]', space=smem, size = 0x4, offset = 0x4, fixed_abs, tag = 'smem constant byte address 0x4 - core index']
  #allocation1 [shape = 'u32[144,128]{1,0:T(1,128)}', space=vmem, size = 0x12000, scoped, tag = 'internal scratch']
  %s0 = inlined_call_operand.vmem [shape: bf16[256,32], index: 0, kind: input, shape index: {}]
  %s1 = inlined_call_operand.vmem [shape: bf16[32,134], index: 1, kind: input, shape index: {}]
  %s2 = inlined_call_operand.vmem [shape: f32[1,134], index: 2, kind: input, shape index: {}]
  %s3 = inlined_call_operand.vmem [shape: bf16[128,48], index: 3, kind: input, shape index: {}]
  %s4 = inlined_call_operand.vmem [shape: f32[1,48], index: 4, kind: input, shape index: {}]
  %s5 = inlined_call_operand.vmem [shape: bf16[6,2], index: 5, kind: input, shape index: {}]
  %s6 = inlined_call_operand.vmem [shape: bf16[2,6], index: 6, kind: input, shape index: {}]
  %s7 = inlined_call_operand.vmem [shape: bf16[6,96], index: 7, kind: input, shape index: {}]
  %s8 = inlined_call_operand.vmem [shape: bf16[48,96], index: 8, kind: input, shape index: {}]
  %s9 = inlined_call_operand.vmem [shape: bf16[96,32], index: 9, kind: input, shape index: {}]
  %s10 = inlined_call_operand.vmem [shape: f32[1,32], index: 10, kind: input, shape index: {}]
  %s11 = inlined_call_operand.vmem [shape: bf16[32,16], index: 11, kind: input, shape index: {}]
  %s12 = inlined_call_operand.vmem [shape: f32[1,16], index: 12, kind: input, shape index: {}]
  %s13 = inlined_call_operand.vmem [shape: bf16[2,16], index: 13, kind: input, shape index: {}]
  %s14 = inlined_call_operand.vmem [shape: f32[2,1], index: 14, kind: input, shape index: {}]
  %s15 = inlined_call_operand.hbm [shape: f32[2,256], index: 15, kind: output, shape index: {}]
  %s16 = sld [smem:[#allocation0]]
  $region93: #{tpu_custom_call.1} parent=0
    _
  %s18 = ssub.s32 1, %s16
  %s19 = scalar_select 0, %s18, %s16
  $region1: #{tpu_custom_call.1} parent=0
    #allocation2 [shape = 'u8[2048]{0}', space=vmem, size = 0x800, scoped, tag = 'output window, operand 0']
    #allocation3 [shape = 's32[2]{0}', space=sflag, size = 0x8, scoped, tag = 'scoped memory for tpu_custom_call.1']
    %20 = vsyncpa [#allocation3], 0
    %s21 = scalar_lea.sflag [#allocation3], 1
    %22 = vsyncpa %s21, 0
    loop: start=0, step=1, limit=4
    $region2: #{tpu_custom_call.1} parent=1 // loop_pre_header
      _
    $region3: #{tpu_custom_call.1} parent=1 // loop_header
      %s24 = sphi 0, %s28
      %p25 = scmp.ge.s32.totalorder %s24, 4
      %s34 = sphi 0, %s36
      %s37 = sphi 0, %s34
      %s38 = sphi 0, %s37
      %s54 = sphi 0, %s38
      %s58 = sphi 0, %s58
      %s60 = sphi 0, %s58
      %s61 = sphi 0, %s60
      %s75 = sphi 0, %s61
      %s79 = sphi 0, %s79
      %s81 = sphi 0, %s79
      %s82 = sphi 0, %s81
      %s96 = sphi 0, %s82
      %s100 = sphi 0, %s100
      %s102 = sphi 0, %s100
      %s103 = sphi 0, %s102
      %s117 = sphi 0, %s103
      %s121 = sphi 0, %s121
      %s123 = sphi 0, %s121
      %s124 = sphi 0, %s123
      %s138 = sphi 0, %s124
      %s142 = sphi 0, %s142
      %s144 = sphi 0, %s142
      %s145 = sphi 0, %s144
      %s159 = sphi 0, %s145
      %s163 = sphi 0, %s163
      %s165 = sphi 0, %s163
      %s166 = sphi 0, %s165
      %s180 = sphi 0, %s166
      %s184 = sphi 0, %s184
      %s186 = sphi 0, %s184
      %s187 = sphi 0, %s186
      %s201 = sphi 0, %s187
      %s205 = sphi 0, %s205
      %s207 = sphi 0, %s205
      %s208 = sphi 0, %s207
      %s222 = sphi 0, %s208
      %s226 = sphi 0, %s226
      %s228 = sphi 0, %s226
      %s229 = sphi 0, %s228
      %s243 = sphi 0, %s229
      %s247 = sphi 0, %s247
      %s249 = sphi 0, %s247
      %s250 = sphi 0, %s249
      %s264 = sphi 0, %s250
      %s268 = sphi 0, %s268
      %s270 = sphi 0, %s268
      %s271 = sphi 0, %s270
      %s285 = sphi 0, %s271
      %s289 = sphi 0, %s289
      %s291 = sphi 0, %s289
      %s292 = sphi 0, %s291
      %s306 = sphi 0, %s292
      %s310 = sphi 0, %s310
      %s312 = sphi 0, %s310
      %s313 = sphi 0, %s312
      %s327 = sphi 0, %s313
      %s331 = sphi 0, %s331
      %s333 = sphi 0, %s331
      %s334 = sphi 0, %s333
      %s348 = sphi 0, %s334
      %s354 = sphi 0, %s356
      %s357 = sphi 0, %s354
      %s358 = sphi 0, %s357
      %s374 = sphi 0, %s358
    $region4: #{tpu_custom_call.1} parent=1 // loop_header_branch
      %27 = sbr.rel (%p25) target = $region8
    $region5: #{tpu_custom_call.1} parent=1 // loop_body
      %s29 = ssub.s32 %s24, 1
      %s30 = ssub.s32 %s24, 2
      %s31 = sadd.s32 %s24, 1
      %s32 = ssub.s32 %s24, %s31
      %p33 = scmp.eq.s32.totalorder %s32, 0
      %s35 = sadd.s32 %s34, 1
      %s36 = scalar_select %p33, %s34, %s35
      %p39 = pneg %p33
      %p40 = scmp.eq.s32.totalorder %s24, 1
      %p41 = por %p39, %p40
      %p42 = scmp.ne.s32.totalorder %s34, %s37
      %p43 = scmp.eq.s32.totalorder %s24, 0
      %p44 = por %p42, %p43
      %p45 = scmp.ne.s32.totalorder %s34, %s37
      %p46 = scmp.eq.s32.totalorder %s29, 1
      %p47 = por %p45, %p46
      %p48 = scmp.ne.s32.totalorder %s37, %s38
      %p49 = scmp.eq.s32.totalorder %s29, 0
      %p50 = por %p48, %p49
      %p51 = scmp.ne.s32.totalorder %s37, %s38
      %p52 = scmp.eq.s32.totalorder %s30, 1
      %p53 = por %p51, %p52
      %p55 = scmp.ne.s32.totalorder %s38, %s54
      %p56 = scmp.eq.s32.totalorder %s30, 0
      %p57 = por %p55, %p56
      %s59 = sadd.s32 %s58, 1
      %p62 = scmp.eq.s32.totalorder %s24, 1
      %p63 = scmp.ne.s32.totalorder %s58, %s60
      %p64 = scmp.eq.s32.totalorder %s24, 0
      %p65 = por %p63, %p64
      %p66 = scmp.ne.s32.totalorder %s58, %s60
      %p67 = scmp.eq.s32.totalorder %s29, 1
      %p68 = por %p66, %p67
      %p69 = scmp.ne.s32.totalorder %s60, %s61
      %p70 = scmp.eq.s32.totalorder %s29, 0
      %p71 = por %p69, %p70
      %p72 = scmp.ne.s32.totalorder %s60, %s61
      %p73 = scmp.eq.s32.totalorder %s30, 1
      %p74 = por %p72, %p73
      %p76 = scmp.ne.s32.totalorder %s61, %s75
      %p77 = scmp.eq.s32.totalorder %s30, 0
      %p78 = por %p76, %p77
      %s80 = sadd.s32 %s79, 1
      %p83 = scmp.eq.s32.totalorder %s24, 1
      %p84 = scmp.ne.s32.totalorder %s79, %s81
      %p85 = scmp.eq.s32.totalorder %s24, 0
      %p86 = por %p84, %p85
      %p87 = scmp.ne.s32.totalorder %s79, %s81
      %p88 = scmp.eq.s32.totalorder %s29, 1
      %p89 = por %p87, %p88
      %p90 = scmp.ne.s32.totalorder %s81, %s82
      %p91 = scmp.eq.s32.totalorder %s29, 0
      %p92 = por %p90, %p91
      %p93 = scmp.ne.s32.totalorder %s81, %s82
      %p94 = scmp.eq.s32.totalorder %s30, 1
      %p95 = por %p93, %p94
      %p97 = scmp.ne.s32.totalorder %s82, %s96
      %p98 = scmp.eq.s32.totalorder %s30, 0
      %p99 = por %p97, %p98
      %s101 = sadd.s32 %s100, 1
      %p104 = scmp.eq.s32.totalorder %s24, 1
      %p105 = scmp.ne.s32.totalorder %s100, %s102
      %p106 = scmp.eq.s32.totalorder %s24, 0
      %p107 = por %p105, %p106
      %p108 = scmp.ne.s32.totalorder %s100, %s102
      %p109 = scmp.eq.s32.totalorder %s29, 1
      %p110 = por %p108, %p109
      %p111 = scmp.ne.s32.totalorder %s102, %s103
      %p112 = scmp.eq.s32.totalorder %s29, 0
      %p113 = por %p111, %p112
      %p114 = scmp.ne.s32.totalorder %s102, %s103
      %p115 = scmp.eq.s32.totalorder %s30, 1
      %p116 = por %p114, %p115
      %p118 = scmp.ne.s32.totalorder %s103, %s117
      %p119 = scmp.eq.s32.totalorder %s30, 0
      %p120 = por %p118, %p119
      %s122 = sadd.s32 %s121, 1
      %p125 = scmp.eq.s32.totalorder %s24, 1
      %p126 = scmp.ne.s32.totalorder %s121, %s123
      %p127 = scmp.eq.s32.totalorder %s24, 0
      %p128 = por %p126, %p127
      %p129 = scmp.ne.s32.totalorder %s121, %s123
      %p130 = scmp.eq.s32.totalorder %s29, 1
      %p131 = por %p129, %p130
      %p132 = scmp.ne.s32.totalorder %s123, %s124
      %p133 = scmp.eq.s32.totalorder %s29, 0
      %p134 = por %p132, %p133
      %p135 = scmp.ne.s32.totalorder %s123, %s124
      %p136 = scmp.eq.s32.totalorder %s30, 1
      %p137 = por %p135, %p136
      %p139 = scmp.ne.s32.totalorder %s124, %s138
      %p140 = scmp.eq.s32.totalorder %s30, 0
      %p141 = por %p139, %p140
      %s143 = sadd.s32 %s142, 1
      %p146 = scmp.eq.s32.totalorder %s24, 1
      %p147 = scmp.ne.s32.totalorder %s142, %s144
      %p148 = scmp.eq.s32.totalorder %s24, 0
      %p149 = por %p147, %p148
      %p150 = scmp.ne.s32.totalorder %s142, %s144
      %p151 = scmp.eq.s32.totalorder %s29, 1
      %p152 = por %p150, %p151
      %p153 = scmp.ne.s32.totalorder %s144, %s145
      %p154 = scmp.eq.s32.totalorder %s29, 0
      %p155 = por %p153, %p154
      %p156 = scmp.ne.s32.totalorder %s144, %s145
      %p157 = scmp.eq.s32.totalorder %s30, 1
      %p158 = por %p156, %p157
      %p160 = scmp.ne.s32.totalorder %s145, %s159
      %p161 = scmp.eq.s32.totalorder %s30, 0
      %p162 = por %p160, %p161
      %s164 = sadd.s32 %s163, 1
      %p167 = scmp.eq.s32.totalorder %s24, 1
      %p168 = scmp.ne.s32.totalorder %s163, %s165
      %p169 = scmp.eq.s32.totalorder %s24, 0
      %p170 = por %p168, %p169
      %p171 = scmp.ne.s32.totalorder %s163, %s165
      %p172 = scmp.eq.s32.totalorder %s29, 1
      %p173 = por %p171, %p172
      %p174 = scmp.ne.s32.totalorder %s165, %s166
      %p175 = scmp.eq.s32.totalorder %s29, 0
      %p176 = por %p174, %p175
      %p177 = scmp.ne.s32.totalorder %s165, %s166
      %p178 = scmp.eq.s32.totalorder %s30, 1
      %p179 = por %p177, %p178
      %p181 = scmp.ne.s32.totalorder %s166, %s180
      %p182 = scmp.eq.s32.totalorder %s30, 0
      %p183 = por %p181, %p182
      %s185 = sadd.s32 %s184, 1
      %p188 = scmp.eq.s32.totalorder %s24, 1
      %p189 = scmp.ne.s32.totalorder %s184, %s186
      %p190 = scmp.eq.s32.totalorder %s24, 0
      %p191 = por %p189, %p190
      %p192 = scmp.ne.s32.totalorder %s184, %s186
      %p193 = scmp.eq.s32.totalorder %s29, 1
      %p194 = por %p192, %p193
      %p195 = scmp.ne.s32.totalorder %s186, %s187
      %p196 = scmp.eq.s32.totalorder %s29, 0
      %p197 = por %p195, %p196
      %p198 = scmp.ne.s32.totalorder %s186, %s187
      %p199 = scmp.eq.s32.totalorder %s30, 1
      %p200 = por %p198, %p199
      %p202 = scmp.ne.s32.totalorder %s187, %s201
      %p203 = scmp.eq.s32.totalorder %s30, 0
      %p204 = por %p202, %p203
      %s206 = sadd.s32 %s205, 1
      %p209 = scmp.eq.s32.totalorder %s24, 1
      %p210 = scmp.ne.s32.totalorder %s205, %s207
      %p211 = scmp.eq.s32.totalorder %s24, 0
      %p212 = por %p210, %p211
      %p213 = scmp.ne.s32.totalorder %s205, %s207
      %p214 = scmp.eq.s32.totalorder %s29, 1
      %p215 = por %p213, %p214
      %p216 = scmp.ne.s32.totalorder %s207, %s208
      %p217 = scmp.eq.s32.totalorder %s29, 0
      %p218 = por %p216, %p217
      %p219 = scmp.ne.s32.totalorder %s207, %s208
      %p220 = scmp.eq.s32.totalorder %s30, 1
      %p221 = por %p219, %p220
      %p223 = scmp.ne.s32.totalorder %s208, %s222
      %p224 = scmp.eq.s32.totalorder %s30, 0
      %p225 = por %p223, %p224
      %s227 = sadd.s32 %s226, 1
      %p230 = scmp.eq.s32.totalorder %s24, 1
      %p231 = scmp.ne.s32.totalorder %s226, %s228
      %p232 = scmp.eq.s32.totalorder %s24, 0
      %p233 = por %p231, %p232
      %p234 = scmp.ne.s32.totalorder %s226, %s228
      %p235 = scmp.eq.s32.totalorder %s29, 1
      %p236 = por %p234, %p235
      %p237 = scmp.ne.s32.totalorder %s228, %s229
      %p238 = scmp.eq.s32.totalorder %s29, 0
      %p239 = por %p237, %p238
      %p240 = scmp.ne.s32.totalorder %s228, %s229
      %p241 = scmp.eq.s32.totalorder %s30, 1
      %p242 = por %p240, %p241
      %p244 = scmp.ne.s32.totalorder %s229, %s243
      %p245 = scmp.eq.s32.totalorder %s30, 0
      %p246 = por %p244, %p245
      %s248 = sadd.s32 %s247, 1
      %p251 = scmp.eq.s32.totalorder %s24, 1
      %p252 = scmp.ne.s32.totalorder %s247, %s249
      %p253 = scmp.eq.s32.totalorder %s24, 0
      %p254 = por %p252, %p253
      %p255 = scmp.ne.s32.totalorder %s247, %s249
      %p256 = scmp.eq.s32.totalorder %s29, 1
      %p257 = por %p255, %p256
      %p258 = scmp.ne.s32.totalorder %s249, %s250
      %p259 = scmp.eq.s32.totalorder %s29, 0
      %p260 = por %p258, %p259
      %p261 = scmp.ne.s32.totalorder %s249, %s250
      %p262 = scmp.eq.s32.totalorder %s30, 1
      %p263 = por %p261, %p262
      %p265 = scmp.ne.s32.totalorder %s250, %s264
      %p266 = scmp.eq.s32.totalorder %s30, 0
      %p267 = por %p265, %p266
      %s269 = sadd.s32 %s268, 1
      %p272 = scmp.eq.s32.totalorder %s24, 1
      %p273 = scmp.ne.s32.totalorder %s268, %s270
      %p274 = scmp.eq.s32.totalorder %s24, 0
      %p275 = por %p273, %p274
      %p276 = scmp.ne.s32.totalorder %s268, %s270
      %p277 = scmp.eq.s32.totalorder %s29, 1
      %p278 = por %p276, %p277
      %p279 = scmp.ne.s32.totalorder %s270, %s271
      %p280 = scmp.eq.s32.totalorder %s29, 0
      %p281 = por %p279, %p280
      %p282 = scmp.ne.s32.totalorder %s270, %s271
      %p283 = scmp.eq.s32.totalorder %s30, 1
      %p284 = por %p282, %p283
      %p286 = scmp.ne.s32.totalorder %s271, %s285
      %p287 = scmp.eq.s32.totalorder %s30, 0
      %p288 = por %p286, %p287
      %s290 = sadd.s32 %s289, 1
      %p293 = scmp.eq.s32.totalorder %s24, 1
      %p294 = scmp.ne.s32.totalorder %s289, %s291
      %p295 = scmp.eq.s32.totalorder %s24, 0
      %p296 = por %p294, %p295
      %p297 = scmp.ne.s32.totalorder %s289, %s291
      %p298 = scmp.eq.s32.totalorder %s29, 1
      %p299 = por %p297, %p298
      %p300 = scmp.ne.s32.totalorder %s291, %s292
      %p301 = scmp.eq.s32.totalorder %s29, 0
      %p302 = por %p300, %p301
      %p303 = scmp.ne.s32.totalorder %s291, %s292
      %p304 = scmp.eq.s32.totalorder %s30, 1
      %p305 = por %p303, %p304
      %p307 = scmp.ne.s32.totalorder %s292, %s306
      %p308 = scmp.eq.s32.totalorder %s30, 0
      %p309 = por %p307, %p308
      %s311 = sadd.s32 %s310, 1
      %p314 = scmp.eq.s32.totalorder %s24, 1
      %p315 = scmp.ne.s32.totalorder %s310, %s312
      %p316 = scmp.eq.s32.totalorder %s24, 0
      %p317 = por %p315, %p316
      %p318 = scmp.ne.s32.totalorder %s310, %s312
      %p319 = scmp.eq.s32.totalorder %s29, 1
      %p320 = por %p318, %p319
      %p321 = scmp.ne.s32.totalorder %s312, %s313
      %p322 = scmp.eq.s32.totalorder %s29, 0
      %p323 = por %p321, %p322
      %p324 = scmp.ne.s32.totalorder %s312, %s313
      %p325 = scmp.eq.s32.totalorder %s30, 1
      %p326 = por %p324, %p325
      %p328 = scmp.ne.s32.totalorder %s313, %s327
      %p329 = scmp.eq.s32.totalorder %s30, 0
      %p330 = por %p328, %p329
      %s332 = sadd.s32 %s331, 1
      %p335 = scmp.eq.s32.totalorder %s24, 1
      %p336 = scmp.ne.s32.totalorder %s331, %s333
      %p337 = scmp.eq.s32.totalorder %s24, 0
      %p338 = por %p336, %p337
      %p339 = scmp.ne.s32.totalorder %s331, %s333
      %p340 = scmp.eq.s32.totalorder %s29, 1
      %p341 = por %p339, %p340
      %p342 = scmp.ne.s32.totalorder %s333, %s334
      %p343 = scmp.eq.s32.totalorder %s29, 0
      %p344 = por %p342, %p343
      %p345 = scmp.ne.s32.totalorder %s333, %s334
      %p346 = scmp.eq.s32.totalorder %s30, 1
      %p347 = por %p345, %p346
      %p349 = scmp.ne.s32.totalorder %s334, %s348
      %p350 = scmp.eq.s32.totalorder %s30, 0
      %p351 = por %p349, %p350
      %s352 = ssub.s32 %s24, %s31
      %p353 = scmp.eq.s32.totalorder %s352, 0
      %s355 = sadd.s32 %s354, 1
      %s356 = scalar_select %p353, %s354, %s355
      %p359 = pneg %p353
      %p360 = scmp.eq.s32.totalorder %s24, 1
      %p361 = por %p359, %p360
      %p362 = scmp.ne.s32.totalorder %s354, %s357
      %p363 = scmp.eq.s32.totalorder %s24, 0
      %p364 = por %p362, %p363
      %p365 = scmp.ne.s32.totalorder %s354, %s357
      %p366 = scmp.eq.s32.totalorder %s29, 1
      %p367 = por %p365, %p366
      %p368 = scmp.ne.s32.totalorder %s357, %s358
      %p369 = scmp.eq.s32.totalorder %s29, 0
      %p370 = por %p368, %p369
      %p371 = scmp.ne.s32.totalorder %s357, %s358
      %p372 = scmp.eq.s32.totalorder %s30, 1
      %p373 = por %p371, %p372
      %p375 = scmp.ne.s32.totalorder %s358, %s374
      %p376 = scmp.eq.s32.totalorder %s30, 0
      %p377 = por %p375, %p376
      %p378 = scmp.le.s32.totalorder 1, %s24
      %p379 = scmp.lt.s32.totalorder %s24, 3
      %p380 = pnand %p378, %p379
      %p381 = pneg %p380
      // Predicated region
      $region9: #{tpu_custom_call.1} parent=5 // pred_check
        _
      $region10: #{tpu_custom_call.1} parent=5 // pred_check_branch
        %383 = sbr.rel (%p380) target = $region12
      $region11: #{tpu_custom_call.1} parent=5 // pred_region
        %s384 = ssub.s32 %s24, 1
        // Predicated region
        $region13: #{tpu_custom_call.1} parent=11 // pred_check
          %p385 = pneg %p71
        $region14: #{tpu_custom_call.1} parent=11 // pred_check_branch
          %387 = sbr.rel (%p385) target = $region16
        $region15: #{tpu_custom_call.1} parent=11 // pred_region
          _
        $region16: #{tpu_custom_call.1} parent=11 // pred_fallthru
          _
        // Predicated region
        $region17: #{tpu_custom_call.1} parent=11 // pred_check
          %p388 = pneg %p92
        $region18: #{tpu_custom_call.1} parent=11 // pred_check_branch
          %390 = sbr.rel (%p388) target = $region20
        $region19: #{tpu_custom_call.1} parent=11 // pred_region
          _
        $region20: #{tpu_custom_call.1} parent=11 // pred_fallthru
          _
        // Predicated region
        $region21: #{tpu_custom_call.1} parent=11 // pred_check
          %p391 = pneg %p113
        $region22: #{tpu_custom_call.1} parent=11 // pred_check_branch
          %393 = sbr.rel (%p391) target = $region24
        $region23: #{tpu_custom_call.1} parent=11 // pred_region
          _
        $region24: #{tpu_custom_call.1} parent=11 // pred_fallthru
          _
        // Predicated region
        $region25: #{tpu_custom_call.1} parent=11 // pred_check
          %p394 = pneg %p134
        $region26: #{tpu_custom_call.1} parent=11 // pred_check_branch
          %396 = sbr.rel (%p394) target = $region28
        $region27: #{tpu_custom_call.1} parent=11 // pred_region
          _
        $region28: #{tpu_custom_call.1} parent=11 // pred_fallthru
          _
        // Predicated region
        $region29: #{tpu_custom_call.1} parent=11 // pred_check
          %p397 = pneg %p155
        $region30: #{tpu_custom_call.1} parent=11 // pred_check_branch
          %399 = sbr.rel (%p397) target = $region32
        $region31: #{tpu_custom_call.1} parent=11 // pred_region
          _
        $region32: #{tpu_custom_call.1} parent=11 // pred_fallthru
          _
        // Predicated region
        $region33: #{tpu_custom_call.1} parent=11 // pred_check
          %p400 = pneg %p176
        $region34: #{tpu_custom_call.1} parent=11 // pred_check_branch
          %402 = sbr.rel (%p400) target = $region36
        $region35: #{tpu_custom_call.1} parent=11 // pred_region
          _
        $region36: #{tpu_custom_call.1} parent=11 // pred_fallthru
          _
        // Predicated region
        $region37: #{tpu_custom_call.1} parent=11 // pred_check
          %p403 = pneg %p197
        $region38: #{tpu_custom_call.1} parent=11 // pred_check_branch
          %405 = sbr.rel (%p403) target = $region40
        $region39: #{tpu_custom_call.1} parent=11 // pred_region
          _
        $region40: #{tpu_custom_call.1} parent=11 // pred_fallthru
          _
        // Predicated region
        $region41: #{tpu_custom_call.1} parent=11 // pred_check
          %p406 = pneg %p218
        $region42: #{tpu_custom_call.1} parent=11 // pred_check_branch
          %408 = sbr.rel (%p406) target = $region44
        $region43: #{tpu_custom_call.1} parent=11 // pred_region
          _
        $region44: #{tpu_custom_call.1} parent=11 // pred_fallthru
          _
        // Predicated region
        $region45: #{tpu_custom_call.1} parent=11 // pred_check
          %p409 = pneg %p239
        $region46: #{tpu_custom_call.1} parent=11 // pred_check_branch
          %411 = sbr.rel (%p409) target = $region48
        $region47: #{tpu_custom_call.1} parent=11 // pred_region
          _
        $region48: #{tpu_custom_call.1} parent=11 // pred_fallthru
          _
        // Predicated region
        $region49: #{tpu_custom_call.1} parent=11 // pred_check
          %p412 = pneg %p260
        $region50: #{tpu_custom_call.1} parent=11 // pred_check_branch
          %414 = sbr.rel (%p412) target = $region52
        $region51: #{tpu_custom_call.1} parent=11 // pred_region
          _
        $region52: #{tpu_custom_call.1} parent=11 // pred_fallthru
          _
        // Predicated region
        $region53: #{tpu_custom_call.1} parent=11 // pred_check
          %p415 = pneg %p281
        $region54: #{tpu_custom_call.1} parent=11 // pred_check_branch
          %417 = sbr.rel (%p415) target = $region56
        $region55: #{tpu_custom_call.1} parent=11 // pred_region
          _
        $region56: #{tpu_custom_call.1} parent=11 // pred_fallthru
          _
        // Predicated region
        $region57: #{tpu_custom_call.1} parent=11 // pred_check
          %p418 = pneg %p302
        $region58: #{tpu_custom_call.1} parent=11 // pred_check_branch
          %420 = sbr.rel (%p418) target = $region60
        $region59: #{tpu_custom_call.1} parent=11 // pred_region
          _
        $region60: #{tpu_custom_call.1} parent=11 // pred_fallthru
          _
        // Predicated region
        $region61: #{tpu_custom_call.1} parent=11 // pred_check
          %p421 = pneg %p323
        $region62: #{tpu_custom_call.1} parent=11 // pred_check_branch
          %423 = sbr.rel (%p421) target = $region64
        $region63: #{tpu_custom_call.1} parent=11 // pred_region
          _
        $region64: #{tpu_custom_call.1} parent=11 // pred_fallthru
          _
        // Predicated region
        $region65: #{tpu_custom_call.1} parent=11 // pred_check
          %p424 = pneg %p344
        $region66: #{tpu_custom_call.1} parent=11 // pred_check_branch
          %426 = sbr.rel (%p424) target = $region68
        $region67: #{tpu_custom_call.1} parent=11 // pred_region
          _
        $region68: #{tpu_custom_call.1} parent=11 // pred_fallthru
          _
      $region12: #{tpu_custom_call.1} parent=5 // pred_fallthru
        _
      %p427 = scmp.lt.s32.totalorder %s24, 2
      // Predicated region
      $region69: #{tpu_custom_call.1} parent=5 // pred_check
        %p428 = pneg %p427
      $region70: #{tpu_custom_call.1} parent=5 // pred_check_branch
        %430 = sbr.rel (%p428) target = $region72
      $region71: #{tpu_custom_call.1} parent=5 // pred_region
        // Predicated region
        $region73: #{tpu_custom_call.1} parent=71 // pred_check
          %p431 = pneg %p44
        $region74: #{tpu_custom_call.1} parent=71 // pred_check_branch
          %433 = sbr.rel (%p431) target = $region76
        $region75: #{tpu_custom_call.1} parent=71 // pred_region
          %s434 = smul.u32 16, %s24
          %p435 = scmp.lt.s32.totalorder %s434, 31
          %s436 = scalar_select %p435, %s434, 31
          %s437 = smul.addr %s436, 4
          %s438 = scalar_lea.vmem %s0, %s437
          %s439 = smul.u32 16, %s24
        $region76: #{tpu_custom_call.1} parent=71 // pred_fallthru
          _
      $region72: #{tpu_custom_call.1} parent=5 // pred_fallthru
        _
      %p440 = scmp.le.s32.totalorder 1, %s24
      %p441 = scmp.lt.s32.totalorder %s24, 3
      %p442 = pnand %p440, %p441
      %p443 = pneg %p442
      // Predicated region
      $region77: #{tpu_custom_call.1} parent=5 // pred_check
        _
      $region78: #{tpu_custom_call.1} parent=5 // pred_check_branch
        %445 = sbr.rel (%p442) target = $region80
      $region79: #{tpu_custom_call.1} parent=5 // pred_region
        %s446 = ssub.s32 %s24, 1
        %s447 = smul.u32 16, %s29
        %p448 = scmp.lt.s32.totalorder %s447, 31
        %s449 = scalar_select %p448, %s447, 31
        %s450 = smul.addr %s449, 4
        %s451 = scalar_lea.vmem %s0, %s450
        %p452 = pneg %p50
        %p453 = pneg %p47
        %p454 = pneg %p71
        %p455 = pneg %p68
        %p456 = pneg %p92
        %p457 = pneg %p89
        %p458 = pneg %p113
        %p459 = pneg %p110
        %p460 = pneg %p134
        %p461 = pneg %p131
        %p462 = pneg %p155
        %p463 = pneg %p152
        %p464 = pneg %p176
        %p465 = pneg %p173
        %p466 = pneg %p197
        %p467 = pneg %p194
        %p468 = pneg %p218
        %p469 = pneg %p215
        %p470 = pneg %p239
        %p471 = pneg %p236
        %p472 = pneg %p260
        %p473 = pneg %p257
        %p474 = pneg %p281
        %p475 = pneg %p278
        %p476 = pneg %p302
        %p477 = pneg %p299
        %p478 = pneg %p323
        %p479 = pneg %p320
        %p480 = pneg %p344
        %p481 = pneg %p341
        %p482 = pneg %p370
        %p483 = pneg %p367
        %s484 = sand.u32 %s357, 1
        %s485 = scalar_lea.sflag [#allocation3], %s484
        %s486 = sand.u32 %s357, 1
        %s487 = smul.addr %s486, 2
        %s488 = scalar_lea.vmem [#allocation2], %s487
        %s489 = smul.u32 16, %s29
        %p490 = scmp.lt.s32.totalorder %s489, 31
        %s491 = scalar_select %p490, %s489, 31
        %s492 = smul.addr %s491, 4
        %s493 = scalar_lea.vmem %s0, %s492
        %s494 = smul.u32 16, %s29
        %v496 = vld [vmem:[%s493] sm:$0xf]
        %v497 = vld [vmem:[%s493 + $0x4] sm:$0xf]
        %v498 = vld [vmem:[%s493 + $0x8] sm:$0xf]
        %v499 = vld [vmem:[%s493 + $0xc] sm:$0xf]
        %v500 = vld [vmem:[%s493 + $0x10] sm:$0xf]
        %v501 = vld [vmem:[%s493 + $0x14] sm:$0xf]
        %v502 = vld [vmem:[%s493 + $0x18] sm:$0xf]
        %v503 = vld [vmem:[%s493 + $0x1c] sm:$0xf]
        %v504 = vld [vmem:[%s493 + $0x20] sm:$0xf]
        %v505 = vld [vmem:[%s493 + $0x24] sm:$0xf]
        %v506 = vld [vmem:[%s493 + $0x28] sm:$0xf]
        %v507 = vld [vmem:[%s493 + $0x2c] sm:$0xf]
        %v508 = vld [vmem:[%s493 + $0x30] sm:$0xf]
        %v509 = vld [vmem:[%s493 + $0x34] sm:$0xf]
        %v510 = vld [vmem:[%s493 + $0x38] sm:$0xf]
        %v511 = vld [vmem:[%s493 + $0x3c] sm:$0xf]
        %v512 = vld [vmem:[%s1] sm:$0xff]
        %v513 = vld [vmem:[%s1 + $0x8] sm:$0xff]
        %v514 = vld [vmem:[%s1 + $0x10] sm:$0xff]
        %v515 = vld [vmem:[%s1 + $0x18] sm:$0xff]
        %v516 = vld [vmem:[%s2] sm:$0x3]
        %v518 = vlaneseq
        %v519 = vshrl.u32 %v518, 7
        %v520 = vsub.s32 0, %v519
        %v521 = vrot.slane %v516, %v520
        %v522 = vlaneseq
        %v523 = vshrl.u32 %v522, 7
        %v524 = vsub.s32 1, %v523
        %v525 = vrot.slane %v516, %v524
        %v544 = vunpack.c.l.b16 %v496
        %v545 = vunpack.c.l.b16 %v497
        %v546 = vunpack.c.l.b16 %v498
        %v547 = vunpack.c.l.b16 %v499
        %v548 = vunpack.c.l.b16 %v500
        %v549 = vunpack.c.l.b16 %v501
        %v550 = vunpack.c.l.b16 %v502
        %v551 = vunpack.c.l.b16 %v503
        %v552 = vunpack.c.l.b16 %v504
        %v553 = vunpack.c.l.b16 %v505
        %v554 = vunpack.c.l.b16 %v506
        %v555 = vunpack.c.l.b16 %v507
        %v556 = vunpack.c.l.b16 %v508
        %v557 = vunpack.c.l.b16 %v509
        %v558 = vunpack.c.l.b16 %v510
        %v559 = vunpack.c.l.b16 %v511
        %v560 = vpack.c.b16 %v545, %v544
        %v561 = vpack.c.b16 %v547, %v546
        %v562 = vpack.c.b16 %v549, %v548
        %v563 = vpack.c.b16 %v551, %v550
        %v564 = vpack.c.b16 %v553, %v552
        %v565 = vpack.c.b16 %v555, %v554
        %v566 = vpack.c.b16 %v557, %v556
        %v567 = vpack.c.b16 %v559, %v558
        %v572 = vunpack.c.l.b16 %v512
        %v573 = vunpack.c.h.b16 %v512
        %v574 = vunpack.c.l.b16 %v513
        %v575 = vunpack.c.h.b16 %v513
        %v576 = vunpack.c.l.b16 %v514
        %v577 = vunpack.c.h.b16 %v514
        %v578 = vunpack.c.l.b16 %v515
        %v579 = vunpack.c.h.b16 %v515
        %v580 = vpack.c.b16 %v574, %v572
        %v581 = vpack.c.b16 %v575, %v573
        %v582 = vpack.c.b16 %v578, %v576
        %v583 = vpack.c.b16 %v579, %v577
        %vm588 = vcmask 261120
        %v590 = vsel %vm588, %v560, 0
        %v593 = vsel %vm588, %v561, 0
        %v596 = vsel %vm588, %v562, 0
        %v599 = vsel %vm588, %v563, 0
        %v602 = vsel %vm588, %v564, 0
        %v605 = vsel %vm588, %v565, 0
        %v608 = vsel %vm588, %v566, 0
        %v611 = vsel %vm588, %v567, 0
        %613 = vmatprep.subr.bf16.mxu0 %v581
        %614 = vmatpush1.bf16.msra.mxu0 %v580
        %615 = vmatprep.subr.bf16.mxu0 %v583
        %616 = vmatpush1.bf16.msra.mxu0 %v582
        %617 = vmatprep.subr.bf16.mxu0 0
        %618 = vmatpush1.bf16.msra.mxu0 0
        %619 = vmatprep.subr.bf16.mxu0 0
        %620 = vmatpush1.bf16.msra.mxu0 0
        %621 = vmatprep.subr.bf16.mxu0 0
        %622 = vmatpush1.bf16.msra.mxu0 0
        %623 = vmatprep.subr.bf16.mxu0 0
        %624 = vmatpush1.bf16.msra.mxu0 0
        %625 = vmatprep.subr.bf16.mxu0 0
        %626 = vmatpush1.bf16.msra.mxu0 0
        %627 = vmatprep.subr.bf16.mxu0 0
        %628 = vmatpush1.bf16.msra.mxu0 0
        %629 = vmatprep.subr.bf16.mxu0 0
        %630 = vmatpush1.bf16.msra.mxu0 0
        %631 = vmatprep.subr.bf16.mxu0 0
        %632 = vmatpush1.bf16.msra.mxu0 0
        %633 = vmatprep.subr.bf16.mxu0 0
        %634 = vmatpush1.bf16.msra.mxu0 0
        %635 = vmatprep.subr.bf16.mxu0 0
        %636 = vmatpush1.bf16.msra.mxu0 0
        %637 = vmatprep.subr.bf16.mxu0 0
        %638 = vmatpush1.bf16.msra.mxu0 0
        %639 = vmatprep.subr.bf16.mxu0 0
        %640 = vmatpush1.bf16.msra.mxu0 0
        %641 = vmatprep.subr.bf16.mxu0 0
        %642 = vmatpush1.bf16.msra.mxu0 0
        %643 = vmatprep.subr.bf16.mxu0 0
        %644 = vmatpush1.bf16.msra.mxu0 0
        %645 = vmatprep.mubr.bf16.mxu0 0
        %646 = vmatmul.mubr.bf16.gmra.mrb[0].mxu0 %v590
        %v647 = vpop.f32.mrb[0].mxu0
        %v648 = vadd.f32 %v521, %v647
        %v649 = vpop.f32.mrb[0].mxu0
        %v650 = vadd.f32 %v525, %v649
        %v651 = vpop.f32.mrb[0].mxu0
        %v652 = vadd.f32 %v521, %v651
        %v653 = vpop.f32.mrb[0].mxu0
        %v654 = vadd.f32 %v525, %v653
        %655 = vmatprep.mubr.bf16.mxu0 0
        %656 = vmatmul.mubr.bf16.gmra.mrb[0].mxu0 %v593
        %v657 = vpop.f32.mrb[0].mxu0
        %v658 = vadd.f32 %v521, %v657
        %v659 = vpop.f32.mrb[0].mxu0
        %v660 = vadd.f32 %v525, %v659
        %v661 = vpop.f32.mrb[0].mxu0
        %v662 = vadd.f32 %v521, %v661
        %v663 = vpop.f32.mrb[0].mxu0
        %v664 = vadd.f32 %v525, %v663
        %665 = vmatprep.mubr.bf16.mxu0 0
        %666 = vmatmul.mubr.bf16.gmra.mrb[0].mxu0 %v596
        %v667 = vpop.f32.mrb[0].mxu0
        %v668 = vadd.f32 %v521, %v667
        %v669 = vpop.f32.mrb[0].mxu0
        %v670 = vadd.f32 %v525, %v669
        %v671 = vpop.f32.mrb[0].mxu0
        %v672 = vadd.f32 %v521, %v671
        %v673 = vpop.f32.mrb[0].mxu0
        %v674 = vadd.f32 %v525, %v673
        %675 = vmatprep.mubr.bf16.mxu0 0
        %676 = vmatmul.mubr.bf16.gmra.mrb[0].mxu0 %v599
        %v677 = vpop.f32.mrb[0].mxu0
        %v678 = vadd.f32 %v521, %v677
        %v679 = vpop.f32.mrb[0].mxu0
        %v680 = vadd.f32 %v525, %v679
        %v681 = vpop.f32.mrb[0].mxu0
        %v682 = vadd.f32 %v521, %v681
        %v683 = vpop.f32.mrb[0].mxu0
        %v684 = vadd.f32 %v525, %v683
        %685 = vmatprep.mubr.bf16.mxu0 0
        %686 = vmatmul.mubr.bf16.gmra.mrb[0].mxu0 %v602
        %v687 = vpop.f32.mrb[0].mxu0
        %v688 = vadd.f32 %v521, %v687
        %v689 = vpop.f32.mrb[0].mxu0
        %v690 = vadd.f32 %v525, %v689
        %v691 = vpop.f32.mrb[0].mxu0
        %v692 = vadd.f32 %v521, %v691
        %v693 = vpop.f32.mrb[0].mxu0
        %v694 = vadd.f32 %v525, %v693
        %695 = vmatprep.mubr.bf16.mxu0 0
        %696 = vmatmul.mubr.bf16.gmra.mrb[0].mxu0 %v605
        %v697 = vpop.f32.mrb[0].mxu0
        %v698 = vadd.f32 %v521, %v697
        %v699 = vpop.f32.mrb[0].mxu0
        %v700 = vadd.f32 %v525, %v699
        %v701 = vpop.f32.mrb[0].mxu0
        %v702 = vadd.f32 %v521, %v701
        %v703 = vpop.f32.mrb[0].mxu0
        %v704 = vadd.f32 %v525, %v703
        %705 = vmatprep.mubr.bf16.mxu0 0
        %706 = vmatmul.mubr.bf16.gmra.mrb[0].mxu0 %v608
        %v707 = vpop.f32.mrb[0].mxu0
        %v708 = vadd.f32 %v521, %v707
        %v709 = vpop.f32.mrb[0].mxu0
        %v710 = vadd.f32 %v525, %v709
        %v711 = vpop.f32.mrb[0].mxu0
        %v712 = vadd.f32 %v521, %v711
        %v713 = vpop.f32.mrb[0].mxu0
        %v714 = vadd.f32 %v525, %v713
        %715 = vmatprep.mubr.bf16.mxu0 0
        %716 = vmatmul.mubr.bf16.gmra.mrb[0].mxu0 %v611
        %v717 = vpop.f32.mrb[0].mxu0
        %v718 = vadd.f32 %v521, %v717
        %v719 = vpop.f32.mrb[0].mxu0
        %v720 = vadd.f32 %v525, %v719
        %v721 = vpop.f32.mrb[0].mxu0
        %v722 = vadd.f32 %v521, %v721
        %v723 = vpop.f32.mrb[0].mxu0
        %v724 = vadd.f32 %v525, %v723
        %725 = vdwg.mxu0
        %v726 = vmax.f32 %v648, 0.0
        %v727 = vmax.f32 %v652, 0.0
        %v728 = vmax.f32 %v658, 0.0
        %v729 = vmax.f32 %v662, 0.0
        %v730 = vmax.f32 %v668, 0.0
        %v731 = vmax.f32 %v672, 0.0
        %v732 = vmax.f32 %v678, 0.0
        %v733 = vmax.f32 %v682, 0.0
        %v734 = vmax.f32 %v688, 0.0
        %v735 = vmax.f32 %v692, 0.0
        %v736 = vmax.f32 %v698, 0.0
        %v737 = vmax.f32 %v702, 0.0
        %v738 = vmax.f32 %v708, 0.0
        %v739 = vmax.f32 %v712, 0.0
        %v740 = vmax.f32 %v718, 0.0
        %v741 = vmax.f32 %v722, 0.0
        %v742 = vld [vmem:[%s3] sm:$0xf]
        %v743 = vld [vmem:[%s3 + $0x4] sm:$0xf]
        %v744 = vld [vmem:[%s3 + $0x8] sm:$0xf]
        %v745 = vld [vmem:[%s3 + $0xc] sm:$0xf]
        %v746 = vld [vmem:[%s3 + $0x10] sm:$0xf]
        %v747 = vld [vmem:[%s3 + $0x14] sm:$0xf]
        %v748 = vld [vmem:[%s3 + $0x18] sm:$0xf]
        %v749 = vld [vmem:[%s3 + $0x1c] sm:$0xf]
        %v750 = vld [vmem:[%s3 + $0x20] sm:$0xf]
        %v751 = vld [vmem:[%s3 + $0x24] sm:$0xf]
        %v752 = vld [vmem:[%s3 + $0x28] sm:$0xf]
        %v753 = vld [vmem:[%s3 + $0x2c] sm:$0xf]
        %v754 = vld [vmem:[%s3 + $0x30] sm:$0xf]
        %v755 = vld [vmem:[%s3 + $0x34] sm:$0xf]
        %v756 = vld [vmem:[%s3 + $0x38] sm:$0xf]
        %v757 = vld [vmem:[%s3 + $0x3c] sm:$0xf]
        %v758 = vld [vmem:[%s4] sm:$0x1]
        %v759 = vpack.c.bf16 %v727, %v726
        %v760 = vpack.c.bf16 %v729, %v728
        %v761 = vpack.c.bf16 %v731, %v730
        %v762 = vpack.c.bf16 %v733, %v732
        %v763 = vpack.c.bf16 %v735, %v734
        %v764 = vpack.c.bf16 %v737, %v736
        %v765 = vpack.c.bf16 %v739, %v738
        %v766 = vpack.c.bf16 %v741, %v740
        %v768 = vlaneseq
        %v769 = vshrl.u32 %v768, 7
        %v770 = vsub.s32 0, %v769
        %v771 = vrot.slane %v758, %v770
        %v789 = vunpack.c.l.b16 %v742
        %v790 = vunpack.c.l.b16 %v743
        %v791 = vunpack.c.l.b16 %v744
        %v792 = vunpack.c.l.b16 %v745
        %v793 = vunpack.c.l.b16 %v746
        %v794 = vunpack.c.l.b16 %v747
        %v795 = vunpack.c.l.b16 %v748
        %v796 = vunpack.c.l.b16 %v749
        %v797 = vunpack.c.l.b16 %v750
        %v798 = vunpack.c.l.b16 %v751
        %v799 = vunpack.c.l.b16 %v752
        %v800 = vunpack.c.l.b16 %v753
        %v801 = vunpack.c.l.b16 %v754
        %v802 = vunpack.c.l.b16 %v755
        %v803 = vunpack.c.l.b16 %v756
        %v804 = vunpack.c.l.b16 %v757
        %v805 = vpack.c.b16 %v790, %v789
        %v806 = vpack.c.b16 %v792, %v791
        %v807 = vpack.c.b16 %v794, %v793
        %v808 = vpack.c.b16 %v796, %v795
        %v809 = vpack.c.b16 %v798, %v797
        %v810 = vpack.c.b16 %v800, %v799
        %v811 = vpack.c.b16 %v802, %v801
        %v812 = vpack.c.b16 %v804, %v803
        %821 = vmatprep.subr.bf16.mxu0 0
        %822 = vmatpush1.bf16.msra.mxu0 %v805
        %823 = vmatprep.subr.bf16.mxu0 0
        %824 = vmatpush1.bf16.msra.mxu0 %v806
        %825 = vmatprep.subr.bf16.mxu0 0
        %826 = vmatpush1.bf16.msra.mxu0 %v807
        %827 = vmatprep.subr.bf16.mxu0 0
        %828 = vmatpush1.bf16.msra.mxu0 %v808
        %829 = vmatprep.subr.bf16.mxu0 0
        %830 = vmatpush1.bf16.msra.mxu0 %v809
        %831 = vmatprep.subr.bf16.mxu0 0
        %832 = vmatpush1.bf16.msra.mxu0 %v810
        %833 = vmatprep.subr.bf16.mxu0 0
        %834 = vmatpush1.bf16.msra.mxu0 %v811
        %835 = vmatprep.subr.bf16.mxu0 0
        %836 = vmatpush1.bf16.msra.mxu0 %v812
        %837 = vmatprep.subr.bf16.mxu0 0
        %838 = vmatpush1.bf16.msra.mxu0 0
        %839 = vmatprep.subr.bf16.mxu0 0
        %840 = vmatpush1.bf16.msra.mxu0 0
        %841 = vmatprep.subr.bf16.mxu0 0
        %842 = vmatpush1.bf16.msra.mxu0 0
        %843 = vmatprep.subr.bf16.mxu0 0
        %844 = vmatpush1.bf16.msra.mxu0 0
        %845 = vmatprep.subr.bf16.mxu0 0
        %846 = vmatpush1.bf16.msra.mxu0 0
        %847 = vmatprep.subr.bf16.mxu0 0
        %848 = vmatpush1.bf16.msra.mxu0 0
        %849 = vmatprep.subr.bf16.mxu0 0
        %850 = vmatpush1.bf16.msra.mxu0 0
        %851 = vmatprep.subr.bf16.mxu0 0
        %852 = vmatpush1.bf16.msra.mxu0 0
        %853 = vmatprep.mubr.bf16.mxu0 0
        %854 = vmatmul.mubr.bf16.gmra.mrb[0].mxu0 %v759
        %v855 = vpop.f32.mrb[0].mxu0
        %v856 = vadd.f32 %v771, %v855
        %v857 = vpop.f32.mrb[0].mxu0
        %v858 = vpop.f32.mrb[0].mxu0
        %v859 = vadd.f32 %v771, %v858
        %v860 = vpop.f32.mrb[0].mxu0
        %861 = vmatprep.mubr.bf16.mxu0 0
        %862 = vmatmul.mubr.bf16.gmra.mrb[0].mxu0 %v760
        %v863 = vpop.f32.mrb[0].mxu0
        %v864 = vadd.f32 %v771, %v863
        %v865 = vpop.f32.mrb[0].mxu0
        %v866 = vpop.f32.mrb[0].mxu0
        %v867 = vadd.f32 %v771, %v866
        %v868 = vpop.f32.mrb[0].mxu0
        %869 = vmatprep.mubr.bf16.mxu0 0
        %870 = vmatmul.mubr.bf16.gmra.mrb[0].mxu0 %v761
        %v871 = vpop.f32.mrb[0].mxu0
        %v872 = vadd.f32 %v771, %v871
        %v873 = vpop.f32.mrb[0].mxu0
        %v874 = vpop.f32.mrb[0].mxu0
        %v875 = vadd.f32 %v771, %v874
        %v876 = vpop.f32.mrb[0].mxu0
        %877 = vmatprep.mubr.bf16.mxu0 0
        %878 = vmatmul.mubr.bf16.gmra.mrb[0].mxu0 %v762
        %v879 = vpop.f32.mrb[0].mxu0
        %v880 = vadd.f32 %v771, %v879
        %v881 = vpop.f32.mrb[0].mxu0
        %v882 = vpop.f32.mrb[0].mxu0
        %v883 = vadd.f32 %v771, %v882
        %v884 = vpop.f32.mrb[0].mxu0
        %885 = vmatprep.mubr.bf16.mxu0 0
        %886 = vmatmul.mubr.bf16.gmra.mrb[0].mxu0 %v763
        %v887 = vpop.f32.mrb[0].mxu0
        %v888 = vadd.f32 %v771, %v887
        %v889 = vpop.f32.mrb[0].mxu0
        %v890 = vpop.f32.mrb[0].mxu0
        %v891 = vadd.f32 %v771, %v890
        %v892 = vpop.f32.mrb[0].mxu0
        %893 = vmatprep.mubr.bf16.mxu0 0
        %894 = vmatmul.mubr.bf16.gmra.mrb[0].mxu0 %v764
        %v895 = vpop.f32.mrb[0].mxu0
        %v896 = vadd.f32 %v771, %v895
        %v897 = vpop.f32.mrb[0].mxu0
        %v898 = vpop.f32.mrb[0].mxu0
        %v899 = vadd.f32 %v771, %v898
        %v900 = vpop.f32.mrb[0].mxu0
        %901 = vmatprep.mubr.bf16.mxu0 0
        %902 = vmatmul.mubr.bf16.gmra.mrb[0].mxu0 %v765
        %v903 = vpop.f32.mrb[0].mxu0
        %v904 = vadd.f32 %v771, %v903
        %v905 = vpop.f32.mrb[0].mxu0
        %v906 = vpop.f32.mrb[0].mxu0
        %v907 = vadd.f32 %v771, %v906
        %v908 = vpop.f32.mrb[0].mxu0
        %909 = vmatprep.mubr.bf16.mxu0 0
        %910 = vmatmul.mubr.bf16.gmra.mrb[0].mxu0 %v766
        %v911 = vpop.f32.mrb[0].mxu0
        %v912 = vadd.f32 %v771, %v911
        %v913 = vpop.f32.mrb[0].mxu0
        %v914 = vpop.f32.mrb[0].mxu0
        %v915 = vadd.f32 %v771, %v914
        %v916 = vpop.f32.mrb[0].mxu0
        %917 = vdwg.mxu0
        %v918 = vmax.f32 %v856, 0.0
        %v919 = vmax.f32 %v859, 0.0
        %v920 = vmax.f32 %v864, 0.0
        %v921 = vmax.f32 %v867, 0.0
        %v922 = vmax.f32 %v872, 0.0
        %v923 = vmax.f32 %v875, 0.0
        %v924 = vmax.f32 %v880, 0.0
        %v925 = vmax.f32 %v883, 0.0
        %v926 = vmax.f32 %v888, 0.0
        %v927 = vmax.f32 %v891, 0.0
        %v928 = vmax.f32 %v896, 0.0
        %v929 = vmax.f32 %v899, 0.0
        %v930 = vmax.f32 %v904, 0.0
        %v931 = vmax.f32 %v907, 0.0
        %v932 = vmax.f32 %v912, 0.0
        %v933 = vmax.f32 %v915, 0.0
        %v934 = vld [vmem:[%s5] sm:$0x7]
        %v935 = vld [vmem:[%s6] sm:$0x1]
        %v936 = vld [vmem:[%s7] sm:$0x7]
        %v937 = vld [vmem:[%s8] sm:$0xf]
        %v938 = vld [vmem:[%s8 + $0x4] sm:$0xf]
        %v939 = vld [vmem:[%s8 + $0x8] sm:$0xf]
        %v940 = vld [vmem:[%s8 + $0xc] sm:$0xf]
        %v941 = vld [vmem:[%s8 + $0x10] sm:$0xf]
        %v942 = vld [vmem:[%s8 + $0x14] sm:$0xf]
        %vm943 = vcmask 48128
        %v944 = vsel %vm943, %v650, -inf
        %945 = vmax.xlane.f32.xlu0 %v944
        %v946 = vpop.xlane.xlu0 %945
        %v947 = vsel %vm943, %v654, -inf
        %948 = vmax.xlane.f32.xlu0 %v947
        %v949 = vpop.xlane.xlu0 %948
        %v950 = vsel %vm943, %v660, -inf
        %951 = vmax.xlane.f32.xlu0 %v950
        %v952 = vpop.xlane.xlu0 %951
        %v953 = vsel %vm943, %v664, -inf
        %954 = vmax.xlane.f32.xlu0 %v953
        %v955 = vpop.xlane.xlu0 %954
        %v956 = vsel %vm943, %v670, -inf
        %957 = vmax.xlane.f32.xlu0 %v956
        %v958 = vpop.xlane.xlu0 %957
        %v959 = vsel %vm943, %v674, -inf
        %960 = vmax.xlane.f32.xlu0 %v959
        %v961 = vpop.xlane.xlu0 %960
        %v962 = vsel %vm943, %v680, -inf
        %963 = vmax.xlane.f32.xlu0 %v962
        %v964 = vpop.xlane.xlu0 %963
        %v965 = vsel %vm943, %v684, -inf
        %966 = vmax.xlane.f32.xlu0 %v965
        %v967 = vpop.xlane.xlu0 %966
        %v968 = vsel %vm943, %v690, -inf
        %969 = vmax.xlane.f32.xlu0 %v968
        %v970 = vpop.xlane.xlu0 %969
        %v971 = vsel %vm943, %v694, -inf
        %972 = vmax.xlane.f32.xlu0 %v971
        %v973 = vpop.xlane.xlu0 %972
        %v974 = vsel %vm943, %v700, -inf
        %975 = vmax.xlane.f32.xlu0 %v974
        %v976 = vpop.xlane.xlu0 %975
        %v977 = vsel %vm943, %v704, -inf
        %978 = vmax.xlane.f32.xlu0 %v977
        %v979 = vpop.xlane.xlu0 %978
        %v980 = vsel %vm943, %v710, -inf
        %981 = vmax.xlane.f32.xlu0 %v980
        %v982 = vpop.xlane.xlu0 %981
        %v983 = vsel %vm943, %v714, -inf
        %984 = vmax.xlane.f32.xlu0 %v983
        %v985 = vpop.xlane.xlu0 %984
        %v986 = vsel %vm943, %v720, -inf
        %987 = vmax.xlane.f32.xlu0 %v986
        %v988 = vpop.xlane.xlu0 %987
        %v989 = vsel %vm943, %v724, -inf
        %990 = vmax.xlane.f32.xlu0 %v989
        %v991 = vpop.xlane.xlu0 %990
        %v992 = vsub.f32 %v650, %v946
        %v993 = vsub.f32 %v654, %v949
        %v994 = vsub.f32 %v660, %v952
        %v995 = vsub.f32 %v664, %v955
        %v996 = vsub.f32 %v670, %v958
        %v997 = vsub.f32 %v674, %v961
        %v998 = vsub.f32 %v680, %v964
        %v999 = vsub.f32 %v684, %v967
        %v1000 = vsub.f32 %v690, %v970
        %v1001 = vsub.f32 %v694, %v973
        %v1002 = vsub.f32 %v700, %v976
        %v1003 = vsub.f32 %v704, %v979
        %v1004 = vsub.f32 %v710, %v982
        %v1005 = vsub.f32 %v714, %v985
        %v1006 = vsub.f32 %v720, %v988
        %v1007 = vsub.f32 %v724, %v991
        %v1008 = vmul.f32 %v992, 1.442695
        %v1009 = vpow.pop %v1008
        %v1010 = vmul.f32 %v993, 1.442695
        %v1011 = vpow.pop %v1010
        %v1012 = vmul.f32 %v994, 1.442695
        %v1013 = vpow.pop %v1012
        %v1014 = vmul.f32 %v995, 1.442695
        %v1015 = vpow.pop %v1014
        %v1016 = vmul.f32 %v996, 1.442695
        %v1017 = vpow.pop %v1016
        %v1018 = vmul.f32 %v997, 1.442695
        %v1019 = vpow.pop %v1018
        %v1020 = vmul.f32 %v998, 1.442695
        %v1021 = vpow.pop %v1020
        %v1022 = vmul.f32 %v999, 1.442695
        %v1023 = vpow.pop %v1022
        %v1024 = vmul.f32 %v1000, 1.442695
        %v1025 = vpow.pop %v1024
        %v1026 = vmul.f32 %v1001, 1.442695
        %v1027 = vpow.pop %v1026
        %v1028 = vmul.f32 %v1002, 1.442695
        %v1029 = vpow.pop %v1028
        %v1030 = vmul.f32 %v1003, 1.442695
        %v1031 = vpow.pop %v1030
        %v1032 = vmul.f32 %v1004, 1.442695
        %v1033 = vpow.pop %v1032
        %v1034 = vmul.f32 %v1005, 1.442695
        %v1035 = vpow.pop %v1034
        %v1036 = vmul.f32 %v1006, 1.442695
        %v1037 = vpow.pop %v1036
        %v1038 = vmul.f32 %v1007, 1.442695
        %v1039 = vpow.pop %v1038
        %v1040 = vpack.c.bf16 %v1011, %v1009
        %v1041 = vpack.c.bf16 %v1015, %v1013
        %v1042 = vpack.c.bf16 %v1019, %v1017
        %v1043 = vpack.c.bf16 %v1023, %v1021
        %v1044 = vpack.c.bf16 %v1027, %v1025
        %v1045 = vpack.c.bf16 %v1031, %v1029
        %v1046 = vpack.c.bf16 %v1035, %v1033
        %v1047 = vpack.c.bf16 %v1039, %v1037
        %v1049 = vsel %vm943, %v1040, 0
        %v1052 = vsel %vm943, %v1041, 0
        %v1055 = vsel %vm943, %v1042, 0
        %v1058 = vsel %vm943, %v1043, 0
        %v1061 = vsel %vm943, %v1044, 0
        %v1064 = vsel %vm943, %v1045, 0
        %v1067 = vsel %vm943, %v1046, 0
        %v1070 = vsel %vm943, %v1047, 0
        %vm1072 = vcmask 1042432
        %v1074 = vsel %vm1072, %v934, 0
        %1076 = vmatprep.subr.bf16.mxu0 0
        %1077 = vmatpush1.bf16.msra.mxu0 %v1074
        %1078 = vmatprep.subr.bf16.mxu0 0
        %1079 = vmatpush1.bf16.msra.mxu0 0
        %1080 = vmatprep.subr.bf16.mxu0 0
        %1081 = vmatpush1.bf16.msra.mxu0 0
        %1082 = vmatprep.subr.bf16.mxu0 0
        %1083 = vmatpush1.bf16.msra.mxu0 0
        %1084 = vmatprep.subr.bf16.mxu0 0
        %1085 = vmatpush1.bf16.msra.mxu0 0
        %1086 = vmatprep.subr.bf16.mxu0 0
        %1087 = vmatpush1.bf16.msra.mxu0 0
        %1088 = vmatprep.subr.bf16.mxu0 0
        %1089 = vmatpush1.bf16.msra.mxu0 0
        %1090 = vmatprep.subr.bf16.mxu0 0
        %1091 = vmatpush1.bf16.msra.mxu0 0
        %1092 = vmatprep.subr.bf16.mxu0 0
        %1093 = vmatpush1.bf16.msra.mxu0 0
        %1094 = vmatprep.subr.bf16.mxu0 0
        %1095 = vmatpush1.bf16.msra.mxu0 0
        %1096 = vmatprep.subr.bf16.mxu0 0
        %1097 = vmatpush1.bf16.msra.mxu0 0
        %1098 = vmatprep.subr.bf16.mxu0 0
        %1099 = vmatpush1.bf16.msra.mxu0 0
        %1100 = vmatprep.subr.bf16.mxu0 0
        %1101 = vmatpush1.bf16.msra.mxu0 0
        %1102 = vmatprep.subr.bf16.mxu0 0
        %1103 = vmatpush1.bf16.msra.mxu0 0
        %1104 = vmatprep.subr.bf16.mxu0 0
        %1105 = vmatpush1.bf16.msra.mxu0 0
        %1106 = vmatprep.subr.bf16.mxu0 0
        %1107 = vmatpush1.bf16.msra.mxu0 0
        %1108 = vmatprep.mubr.bf16.mxu0 0
        %1109 = vmatmul.mubr.bf16.gmra.mrb[0].mxu0 %v1049
        %v1110 = vpop.f32.mrb[0].mxu0
        %v1111 = vadd.f32 0.0, %v1110
        %v1112 = vpop.f32.mrb[0].mxu0
        %v1113 = vpop.f32.mrb[0].mxu0
        %v1114 = vadd.f32 0.0, %v1113
        %v1115 = vpop.f32.mrb[0].mxu0
        %1116 = vmatprep.mubr.bf16.mxu0 0
        %1117 = vmatmul.mubr.bf16.gmra.mrb[0].mxu0 %v1052
        %v1118 = vpop.f32.mrb[0].mxu0
        %v1119 = vadd.f32 0.0, %v1118
        %v1120 = vpop.f32.mrb[0].mxu0
        %v1121 = vpop.f32.mrb[0].mxu0
        %v1122 = vadd.f32 0.0, %v1121
        %v1123 = vpop.f32.mrb[0].mxu0
        %1124 = vmatprep.mubr.bf16.mxu0 0
        %1125 = vmatmul.mubr.bf16.gmra.mrb[0].mxu0 %v1055
        %v1126 = vpop.f32.mrb[0].mxu0
        %v1127 = vadd.f32 0.0, %v1126
        %v1128 = vpop.f32.mrb[0].mxu0
        %v1129 = vpop.f32.mrb[0].mxu0
        %v1130 = vadd.f32 0.0, %v1129
        %v1131 = vpop.f32.mrb[0].mxu0
        %1132 = vmatprep.mubr.bf16.mxu0 0
        %1133 = vmatmul.mubr.bf16.gmra.mrb[0].mxu0 %v1058
        %v1134 = vpop.f32.mrb[0].mxu0
        %v1135 = vadd.f32 0.0, %v1134
        %v1136 = vpop.f32.mrb[0].mxu0
        %v1137 = vpop.f32.mrb[0].mxu0
        %v1138 = vadd.f32 0.0, %v1137
        %v1139 = vpop.f32.mrb[0].mxu0
        %1140 = vmatprep.mubr.bf16.mxu0 0
        %1141 = vmatmul.mubr.bf16.gmra.mrb[0].mxu0 %v1061
        %v1142 = vpop.f32.mrb[0].mxu0
        %v1143 = vadd.f32 0.0, %v1142
        %v1144 = vpop.f32.mrb[0].mxu0
        %v1145 = vpop.f32.mrb[0].mxu0
        %v1146 = vadd.f32 0.0, %v1145
        %v1147 = vpop.f32.mrb[0].mxu0
        %1148 = vmatprep.mubr.bf16.mxu0 0
        %1149 = vmatmul.mubr.bf16.gmra.mrb[0].mxu0 %v1064
        %v1150 = vpop.f32.mrb[0].mxu0
        %v1151 = vadd.f32 0.0, %v1150
        %v1152 = vpop.f32.mrb[0].mxu0
        %v1153 = vpop.f32.mrb[0].mxu0
        %v1154 = vadd.f32 0.0, %v1153
        %v1155 = vpop.f32.mrb[0].mxu0
        %1156 = vmatprep.mubr.bf16.mxu0 0
        %1157 = vmatmul.mubr.bf16.gmra.mrb[0].mxu0 %v1067
        %v1158 = vpop.f32.mrb[0].mxu0
        %v1159 = vadd.f32 0.0, %v1158
        %v1160 = vpop.f32.mrb[0].mxu0
        %v1161 = vpop.f32.mrb[0].mxu0
        %v1162 = vadd.f32 0.0, %v1161
        %v1163 = vpop.f32.mrb[0].mxu0
        %1164 = vmatprep.mubr.bf16.mxu0 0
        %1165 = vmatmul.mubr.bf16.gmra.mrb[0].mxu0 %v1070
        %v1166 = vpop.f32.mrb[0].mxu0
        %v1167 = vadd.f32 0.0, %v1166
        %v1168 = vpop.f32.mrb[0].mxu0
        %v1169 = vpop.f32.mrb[0].mxu0
        %v1170 = vadd.f32 0.0, %v1169
        %v1171 = vpop.f32.mrb[0].mxu0
        %1172 = vdwg.mxu0
        %v1173 = vrcp.pop %v1111
        %v1174 = vrcp.pop %v1114
        %v1175 = vrcp.pop %v1119
        %v1176 = vrcp.pop %v1122
        %v1177 = vrcp.pop %v1127
        %v1178 = vrcp.pop %v1130
        %v1179 = vrcp.pop %v1135
        %v1180 = vrcp.pop %v1138
        %v1181 = vrcp.pop %v1143
        %v1182 = vrcp.pop %v1146
        %v1183 = vrcp.pop %v1151
        %v1184 = vrcp.pop %v1154
        %v1185 = vrcp.pop %v1159
        %v1186 = vrcp.pop %v1162
        %v1187 = vrcp.pop %v1167
        %v1188 = vrcp.pop %v1170
        %v1189 = vpack.c.bf16 %v1174, %v1173
        %v1190 = vpack.c.bf16 %v1176, %v1175
        %v1191 = vpack.c.bf16 %v1178, %v1177
        %v1192 = vpack.c.bf16 %v1180, %v1179
        %v1193 = vpack.c.bf16 %v1182, %v1181
        %v1194 = vpack.c.bf16 %v1184, %v1183
        %v1195 = vpack.c.bf16 %v1186, %v1185
        %v1196 = vpack.c.bf16 %v1188, %v1187
        %vm1197 = vcmask 15360
        %v1199 = vsel %vm1197, %v1189, 0
        %v1202 = vsel %vm1197, %v1190, 0
        %v1205 = vsel %vm1197, %v1191, 0
        %v1208 = vsel %vm1197, %v1192, 0
        %v1211 = vsel %vm1197, %v1193, 0
        %v1214 = vsel %vm1197, %v1194, 0
        %v1217 = vsel %vm1197, %v1195, 0
        %v1220 = vsel %vm1197, %v1196, 0
        %vm1222 = vcmask 1040384
        %v1224 = vsel %vm1222, %v935, 0
        %1226 = vmatprep.subr.bf16.mxu0 0
        %1227 = vmatpush1.bf16.msra.mxu0 %v1224
        %1228 = vmatprep.subr.bf16.mxu0 0
        %1229 = vmatpush1.bf16.msra.mxu0 0
        %1230 = vmatprep.subr.bf16.mxu0 0
        %1231 = vmatpush1.bf16.msra.mxu0 0
        %1232 = vmatprep.subr.bf16.mxu0 0
        %1233 = vmatpush1.bf16.msra.mxu0 0
        %1234 = vmatprep.subr.bf16.mxu0 0
        %1235 = vmatpush1.bf16.msra.mxu0 0
        %1236 = vmatprep.subr.bf16.mxu0 0
        %1237 = vmatpush1.bf16.msra.mxu0 0
        %1238 = vmatprep.subr.bf16.mxu0 0
        %1239 = vmatpush1.bf16.msra.mxu0 0
        %1240 = vmatprep.subr.bf16.mxu0 0
        %1241 = vmatpush1.bf16.msra.mxu0 0
        %1242 = vmatprep.subr.bf16.mxu0 0
        %1243 = vmatpush1.bf16.msra.mxu0 0
        %1244 = vmatprep.subr.bf16.mxu0 0
        %1245 = vmatpush1.bf16.msra.mxu0 0
        %1246 = vmatprep.subr.bf16.mxu0 0
        %1247 = vmatpush1.bf16.msra.mxu0 0
        %1248 = vmatprep.subr.bf16.mxu0 0
        %1249 = vmatpush1.bf16.msra.mxu0 0
        %1250 = vmatprep.subr.bf16.mxu0 0
        %1251 = vmatpush1.bf16.msra.mxu0 0
        %1252 = vmatprep.subr.bf16.mxu0 0
        %1253 = vmatpush1.bf16.msra.mxu0 0
        %1254 = vmatprep.subr.bf16.mxu0 0
        %1255 = vmatpush1.bf16.msra.mxu0 0
        %1256 = vmatprep.subr.bf16.mxu0 0
        %1257 = vmatpush1.bf16.msra.mxu0 0
        %1258 = vmatprep.mubr.bf16.mxu0 0
        %1259 = vmatmul.mubr.bf16.gmra.mrb[0].mxu0 %v1199
        %v1260 = vpop.f32.mrb[0].mxu0
        %v1261 = vadd.f32 0.0, %v1260
        %v1262 = vpop.f32.mrb[0].mxu0
        %v1263 = vpop.f32.mrb[0].mxu0
        %v1264 = vadd.f32 0.0, %v1263
        %v1265 = vpop.f32.mrb[0].mxu0
        %1266 = vmatprep.mubr.bf16.mxu0 0
        %1267 = vmatmul.mubr.bf16.gmra.mrb[0].mxu0 %v1202
        %v1268 = vpop.f32.mrb[0].mxu0
        %v1269 = vadd.f32 0.0, %v1268
        %v1270 = vpop.f32.mrb[0].mxu0
        %v1271 = vpop.f32.mrb[0].mxu0
        %v1272 = vadd.f32 0.0, %v1271
        %v1273 = vpop.f32.mrb[0].mxu0
        %1274 = vmatprep.mubr.bf16.mxu0 0
        %1275 = vmatmul.mubr.bf16.gmra.mrb[0].mxu0 %v1205
        %v1276 = vpop.f32.mrb[0].mxu0
        %v1277 = vadd.f32 0.0, %v1276
        %v1278 = vpop.f32.mrb[0].mxu0
        %v1279 = vpop.f32.mrb[0].mxu0
        %v1280 = vadd.f32 0.0, %v1279
        %v1281 = vpop.f32.mrb[0].mxu0
        %1282 = vmatprep.mubr.bf16.mxu0 0
        %1283 = vmatmul.mubr.bf16.gmra.mrb[0].mxu0 %v1208
        %v1284 = vpop.f32.mrb[0].mxu0
        %v1285 = vadd.f32 0.0, %v1284
        %v1286 = vpop.f32.mrb[0].mxu0
        %v1287 = vpop.f32.mrb[0].mxu0
        %v1288 = vadd.f32 0.0, %v1287
        %v1289 = vpop.f32.mrb[0].mxu0
        %1290 = vmatprep.mubr.bf16.mxu0 0
        %1291 = vmatmul.mubr.bf16.gmra.mrb[0].mxu0 %v1211
        %v1292 = vpop.f32.mrb[0].mxu0
        %v1293 = vadd.f32 0.0, %v1292
        %v1294 = vpop.f32.mrb[0].mxu0
        %v1295 = vpop.f32.mrb[0].mxu0
        %v1296 = vadd.f32 0.0, %v1295
        %v1297 = vpop.f32.mrb[0].mxu0
        %1298 = vmatprep.mubr.bf16.mxu0 0
        %1299 = vmatmul.mubr.bf16.gmra.mrb[0].mxu0 %v1214
        %v1300 = vpop.f32.mrb[0].mxu0
        %v1301 = vadd.f32 0.0, %v1300
        %v1302 = vpop.f32.mrb[0].mxu0
        %v1303 = vpop.f32.mrb[0].mxu0
        %v1304 = vadd.f32 0.0, %v1303
        %v1305 = vpop.f32.mrb[0].mxu0
        %1306 = vmatprep.mubr.bf16.mxu0 0
        %1307 = vmatmul.mubr.bf16.gmra.mrb[0].mxu0 %v1217
        %v1308 = vpop.f32.mrb[0].mxu0
        %v1309 = vadd.f32 0.0, %v1308
        %v1310 = vpop.f32.mrb[0].mxu0
        %v1311 = vpop.f32.mrb[0].mxu0
        %v1312 = vadd.f32 0.0, %v1311
        %v1313 = vpop.f32.mrb[0].mxu0
        %1314 = vmatprep.mubr.bf16.mxu0 0
        %1315 = vmatmul.mubr.bf16.gmra.mrb[0].mxu0 %v1220
        %v1316 = vpop.f32.mrb[0].mxu0
        %v1317 = vadd.f32 0.0, %v1316
        %v1318 = vpop.f32.mrb[0].mxu0
        %v1319 = vpop.f32.mrb[0].mxu0
        %v1320 = vadd.f32 0.0, %v1319
        %v1321 = vpop.f32.mrb[0].mxu0
        %1322 = vdwg.mxu0
        %v1323 = vmul.f32 %v1009, %v1261
        %v1324 = vmul.f32 %v1011, %v1264
        %v1325 = vmul.f32 %v1013, %v1269
        %v1326 = vmul.f32 %v1015, %v1272
        %v1327 = vmul.f32 %v1017, %v1277
        %v1328 = vmul.f32 %v1019, %v1280
        %v1329 = vmul.f32 %v1021, %v1285
        %v1330 = vmul.f32 %v1023, %v1288
        %v1331 = vmul.f32 %v1025, %v1293
        %v1332 = vmul.f32 %v1027, %v1296
        %v1333 = vmul.f32 %v1029, %v1301
        %v1334 = vmul.f32 %v1031, %v1304
        %v1335 = vmul.f32 %v1033, %v1309
        %v1336 = vmul.f32 %v1035, %v1312
        %v1337 = vmul.f32 %v1037, %v1317
        %v1338 = vmul.f32 %v1039, %v1320
        %v1339 = vpack.c.bf16 %v1324, %v1323
        %v1340 = vpack.c.bf16 %v1326, %v1325
        %v1341 = vpack.c.bf16 %v1328, %v1327
        %v1342 = vpack.c.bf16 %v1330, %v1329
        %v1343 = vpack.c.bf16 %v1332, %v1331
        %v1344 = vpack.c.bf16 %v1334, %v1333
        %v1345 = vpack.c.bf16 %v1336, %v1335
        %v1346 = vpack.c.bf16 %v1338, %v1337
        %v1348 = vsel %vm943, %v1339, 0
        %v1351 = vsel %vm943, %v1340, 0
        %v1354 = vsel %vm943, %v1341, 0
        %v1357 = vsel %vm943, %v1342, 0
        %v1360 = vsel %vm943, %v1343, 0
        %v1363 = vsel %vm943, %v1344, 0
        %v1366 = vsel %vm943, %v1345, 0
        %v1369 = vsel %vm943, %v1346, 0
        %v1372 = vsel %vm1072, %v936, 0
        %1374 = vmatprep.subr.bf16.mxu0 0
        %1375 = vmatpush1.bf16.msra.mxu0 %v1372
        %1376 = vmatprep.subr.bf16.mxu0 0
        %1377 = vmatpush1.bf16.msra.mxu0 0
        %1378 = vmatprep.subr.bf16.mxu0 0
        %1379 = vmatpush1.bf16.msra.mxu0 0
        %1380 = vmatprep.subr.bf16.mxu0 0
        %1381 = vmatpush1.bf16.msra.mxu0 0
        %1382 = vmatprep.subr.bf16.mxu0 0
        %1383 = vmatpush1.bf16.msra.mxu0 0
        %1384 = vmatprep.subr.bf16.mxu0 0
        %1385 = vmatpush1.bf16.msra.mxu0 0
        %1386 = vmatprep.subr.bf16.mxu0 0
        %1387 = vmatpush1.bf16.msra.mxu0 0
        %1388 = vmatprep.subr.bf16.mxu0 0
        %1389 = vmatpush1.bf16.msra.mxu0 0
        %1390 = vmatprep.subr.bf16.mxu0 0
        %1391 = vmatpush1.bf16.msra.mxu0 0
        %1392 = vmatprep.subr.bf16.mxu0 0
        %1393 = vmatpush1.bf16.msra.mxu0 0
        %1394 = vmatprep.subr.bf16.mxu0 0
        %1395 = vmatpush1.bf16.msra.mxu0 0
        %1396 = vmatprep.subr.bf16.mxu0 0
        %1397 = vmatpush1.bf16.msra.mxu0 0
        %1398 = vmatprep.subr.bf16.mxu0 0
        %1399 = vmatpush1.bf16.msra.mxu0 0
        %1400 = vmatprep.subr.bf16.mxu0 0
        %1401 = vmatpush1.bf16.msra.mxu0 0
        %1402 = vmatprep.subr.bf16.mxu0 0
        %1403 = vmatpush1.bf16.msra.mxu0 0
        %1404 = vmatprep.subr.bf16.mxu0 0
        %1405 = vmatpush1.bf16.msra.mxu0 0
        %1406 = vmatprep.mubr.bf16.mxu0 0
        %1407 = vmatmul.mubr.bf16.gmra.mrb[0].mxu0 %v1348
        %v1408 = vpop.f32.mrb[0].mxu0
        %v1409 = vadd.f32 0.0, %v1408
        %v1410 = vpop.f32.mrb[0].mxu0
        %v1411 = vpop.f32.mrb[0].mxu0
        %v1412 = vadd.f32 0.0, %v1411
        %v1413 = vpop.f32.mrb[0].mxu0
        %1414 = vmatprep.mubr.bf16.mxu0 0
        %1415 = vmatmul.mubr.bf16.gmra.mrb[0].mxu0 %v1351
        %v1416 = vpop.f32.mrb[0].mxu0
        %v1417 = vadd.f32 0.0, %v1416
        %v1418 = vpop.f32.mrb[0].mxu0
        %v1419 = vpop.f32.mrb[0].mxu0
        %v1420 = vadd.f32 0.0, %v1419
        %v1421 = vpop.f32.mrb[0].mxu0
        %1422 = vmatprep.mubr.bf16.mxu0 0
        %1423 = vmatmul.mubr.bf16.gmra.mrb[0].mxu0 %v1354
        %v1424 = vpop.f32.mrb[0].mxu0
        %v1425 = vadd.f32 0.0, %v1424
        %v1426 = vpop.f32.mrb[0].mxu0
        %v1427 = vpop.f32.mrb[0].mxu0
        %v1428 = vadd.f32 0.0, %v1427
        %v1429 = vpop.f32.mrb[0].mxu0
        %1430 = vmatprep.mubr.bf16.mxu0 0
        %1431 = vmatmul.mubr.bf16.gmra.mrb[0].mxu0 %v1357
        %v1432 = vpop.f32.mrb[0].mxu0
        %v1433 = vadd.f32 0.0, %v1432
        %v1434 = vpop.f32.mrb[0].mxu0
        %v1435 = vpop.f32.mrb[0].mxu0
        %v1436 = vadd.f32 0.0, %v1435
        %v1437 = vpop.f32.mrb[0].mxu0
        %1438 = vmatprep.mubr.bf16.mxu0 0
        %1439 = vmatmul.mubr.bf16.gmra.mrb[0].mxu0 %v1360
        %v1440 = vpop.f32.mrb[0].mxu0
        %v1441 = vadd.f32 0.0, %v1440
        %v1442 = vpop.f32.mrb[0].mxu0
        %v1443 = vpop.f32.mrb[0].mxu0
        %v1444 = vadd.f32 0.0, %v1443
        %v1445 = vpop.f32.mrb[0].mxu0
        %1446 = vmatprep.mubr.bf16.mxu0 0
        %1447 = vmatmul.mubr.bf16.gmra.mrb[0].mxu0 %v1363
        %v1448 = vpop.f32.mrb[0].mxu0
        %v1449 = vadd.f32 0.0, %v1448
        %v1450 = vpop.f32.mrb[0].mxu0
        %v1451 = vpop.f32.mrb[0].mxu0
        %v1452 = vadd.f32 0.0, %v1451
        %v1453 = vpop.f32.mrb[0].mxu0
        %1454 = vmatprep.mubr.bf16.mxu0 0
        %1455 = vmatmul.mubr.bf16.gmra.mrb[0].mxu0 %v1366
        %v1456 = vpop.f32.mrb[0].mxu0
        %v1457 = vadd.f32 0.0, %v1456
        %v1458 = vpop.f32.mrb[0].mxu0
        %v1459 = vpop.f32.mrb[0].mxu0
        %v1460 = vadd.f32 0.0, %v1459
        %v1461 = vpop.f32.mrb[0].mxu0
        %1462 = vmatprep.mubr.bf16.mxu0 0
        %1463 = vmatmul.mubr.bf16.gmra.mrb[0].mxu0 %v1369
        %v1464 = vpop.f32.mrb[0].mxu0
        %v1465 = vadd.f32 0.0, %v1464
        %v1466 = vpop.f32.mrb[0].mxu0
        %v1467 = vpop.f32.mrb[0].mxu0
        %v1468 = vadd.f32 0.0, %v1467
        %v1469 = vpop.f32.mrb[0].mxu0
        %1470 = vdwg.mxu0
        %v1471 = vpack.c.bf16 %v919, %v918
        %v1472 = vpack.c.bf16 %v921, %v920
        %v1473 = vpack.c.bf16 %v923, %v922
        %v1474 = vpack.c.bf16 %v925, %v924
        %v1475 = vpack.c.bf16 %v927, %v926
        %v1476 = vpack.c.bf16 %v929, %v928
        %v1477 = vpack.c.bf16 %v931, %v930
        %v1478 = vpack.c.bf16 %v933, %v932
        %v1485 = vunpack.c.l.b16 %v937
        %v1486 = vunpack.c.l.b16 %v938
        %v1487 = vunpack.c.l.b16 %v939
        %v1488 = vunpack.c.l.b16 %v940
        %v1489 = vunpack.c.l.b16 %v941
        %v1490 = vunpack.c.l.b16 %v942
        %v1491 = vpack.c.b16 %v1486, %v1485
        %v1492 = vpack.c.b16 %v1488, %v1487
        %v1493 = vpack.c.b16 %v1490, %v1489
        %vm1497 = vcmask 392192
        %v1499 = vsel %vm1497, %v1471, 0
        %v1502 = vsel %vm1497, %v1472, 0
        %v1505 = vsel %vm1497, %v1473, 0
        %v1508 = vsel %vm1497, %v1474, 0
        %v1511 = vsel %vm1497, %v1475, 0
        %v1514 = vsel %vm1497, %v1476, 0
        %v1517 = vsel %vm1497, %v1477, 0
        %v1520 = vsel %vm1497, %v1478, 0
        %1522 = vmatprep.subr.bf16.mxu0 0
        %1523 = vmatpush1.bf16.msra.mxu0 %v1491
        %1524 = vmatprep.subr.bf16.mxu0 0
        %1525 = vmatpush1.bf16.msra.mxu0 %v1492
        %1526 = vmatprep.subr.bf16.mxu0 0
        %1527 = vmatpush1.bf16.msra.mxu0 %v1493
        %1528 = vmatprep.subr.bf16.mxu0 0
        %1529 = vmatpush1.bf16.msra.mxu0 0
        %1530 = vmatprep.subr.bf16.mxu0 0
        %1531 = vmatpush1.bf16.msra.mxu0 0
        %1532 = vmatprep.subr.bf16.mxu0 0
        %1533 = vmatpush1.bf16.msra.mxu0 0
        %1534 = vmatprep.subr.bf16.mxu0 0
        %1535 = vmatpush1.bf16.msra.mxu0 0
        %1536 = vmatprep.subr.bf16.mxu0 0
        %1537 = vmatpush1.bf16.msra.mxu0 0
        %1538 = vmatprep.subr.bf16.mxu0 0
        %1539 = vmatpush1.bf16.msra.mxu0 0
        %1540 = vmatprep.subr.bf16.mxu0 0
        %1541 = vmatpush1.bf16.msra.mxu0 0
        %1542 = vmatprep.subr.bf16.mxu0 0
        %1543 = vmatpush1.bf16.msra.mxu0 0
        %1544 = vmatprep.subr.bf16.mxu0 0
        %1545 = vmatpush1.bf16.msra.mxu0 0
        %1546 = vmatprep.subr.bf16.mxu0 0
        %1547 = vmatpush1.bf16.msra.mxu0 0
        %1548 = vmatprep.subr.bf16.mxu0 0
        %1549 = vmatpush1.bf16.msra.mxu0 0
        %1550 = vmatprep.subr.bf16.mxu0 0
        %1551 = vmatpush1.bf16.msra.mxu0 0
        %1552 = vmatprep.subr.bf16.mxu0 0
        %1553 = vmatpush1.bf16.msra.mxu0 0
        %1554 = vmatprep.mubr.bf16.mxu0 0
        %1555 = vmatmul.mubr.bf16.gmra.mrb[0].mxu0 %v1499
        %v1556 = vpop.f32.mrb[0].mxu0
        %v1557 = vadd.f32 0.0, %v1556
        %v1558 = vpop.f32.mrb[0].mxu0
        %v1559 = vpop.f32.mrb[0].mxu0
        %v1560 = vadd.f32 0.0, %v1559
        %v1561 = vpop.f32.mrb[0].mxu0
        %1562 = vmatprep.mubr.bf16.mxu0 0
        %1563 = vmatmul.mubr.bf16.gmra.mrb[0].mxu0 %v1502
        %v1564 = vpop.f32.mrb[0].mxu0
        %v1565 = vadd.f32 0.0, %v1564
        %v1566 = vpop.f32.mrb[0].mxu0
        %v1567 = vpop.f32.mrb[0].mxu0
        %v1568 = vadd.f32 0.0, %v1567
        %v1569 = vpop.f32.mrb[0].mxu0
        %1570 = vmatprep.mubr.bf16.mxu0 0
        %1571 = vmatmul.mubr.bf16.gmra.mrb[0].mxu0 %v1505
        %v1572 = vpop.f32.mrb[0].mxu0
        %v1573 = vadd.f32 0.0, %v1572
        %v1574 = vpop.f32.mrb[0].mxu0
        %v1575 = vpop.f32.mrb[0].mxu0
        %v1576 = vadd.f32 0.0, %v1575
        %v1577 = vpop.f32.mrb[0].mxu0
        %1578 = vmatprep.mubr.bf16.mxu0 0
        %1579 = vmatmul.mubr.bf16.gmra.mrb[0].mxu0 %v1508
        %v1580 = vpop.f32.mrb[0].mxu0
        %v1581 = vadd.f32 0.0, %v1580
        %v1582 = vpop.f32.mrb[0].mxu0
        %v1583 = vpop.f32.mrb[0].mxu0
        %v1584 = vadd.f32 0.0, %v1583
        %v1585 = vpop.f32.mrb[0].mxu0
        %1586 = vmatprep.mubr.bf16.mxu0 0
        %1587 = vmatmul.mubr.bf16.gmra.mrb[0].mxu0 %v1511
        %v1588 = vpop.f32.mrb[0].mxu0
        %v1589 = vadd.f32 0.0, %v1588
        %v1590 = vpop.f32.mrb[0].mxu0
        %v1591 = vpop.f32.mrb[0].mxu0
        %v1592 = vadd.f32 0.0, %v1591
        %v1593 = vpop.f32.mrb[0].mxu0
        %1594 = vmatprep.mubr.bf16.mxu0 0
        %1595 = vmatmul.mubr.bf16.gmra.mrb[0].mxu0 %v1514
        %v1596 = vpop.f32.mrb[0].mxu0
        %v1597 = vadd.f32 0.0, %v1596
        %v1598 = vpop.f32.mrb[0].mxu0
        %v1599 = vpop.f32.mrb[0].mxu0
        %v1600 = vadd.f32 0.0, %v1599
        %v1601 = vpop.f32.mrb[0].mxu0
        %1602 = vmatprep.mubr.bf16.mxu0 0
        %1603 = vmatmul.mubr.bf16.gmra.mrb[0].mxu0 %v1517
        %v1604 = vpop.f32.mrb[0].mxu0
        %v1605 = vadd.f32 0.0, %v1604
        %v1606 = vpop.f32.mrb[0].mxu0
        %v1607 = vpop.f32.mrb[0].mxu0
        %v1608 = vadd.f32 0.0, %v1607
        %v1609 = vpop.f32.mrb[0].mxu0
        %1610 = vmatprep.mubr.bf16.mxu0 0
        %1611 = vmatmul.mubr.bf16.gmra.mrb[0].mxu0 %v1520
        %v1612 = vpop.f32.mrb[0].mxu0
        %v1613 = vadd.f32 0.0, %v1612
        %v1614 = vpop.f32.mrb[0].mxu0
        %v1615 = vpop.f32.mrb[0].mxu0
        %v1616 = vadd.f32 0.0, %v1615
        %v1617 = vpop.f32.mrb[0].mxu0
        %1618 = vdwg.mxu0
        %v1619 = vmul.f32 %v1409, %v1557
        %v1620 = vmul.f32 %v1412, %v1560
        %v1621 = vmul.f32 %v1417, %v1565
        %v1622 = vmul.f32 %v1420, %v1568
        %v1623 = vmul.f32 %v1425, %v1573
        %v1624 = vmul.f32 %v1428, %v1576
        %v1625 = vmul.f32 %v1433, %v1581
        %v1626 = vmul.f32 %v1436, %v1584
        %v1627 = vmul.f32 %v1441, %v1589
        %v1628 = vmul.f32 %v1444, %v1592
        %v1629 = vmul.f32 %v1449, %v1597
        %v1630 = vmul.f32 %v1452, %v1600
        %v1631 = vmul.f32 %v1457, %v1605
        %v1632 = vmul.f32 %v1460, %v1608
        %v1633 = vmul.f32 %v1465, %v1613
        %v1634 = vmul.f32 %v1468, %v1616
        %v1635 = vld [vmem:[%s9] sm:$0xf]
        %v1636 = vld [vmem:[%s9 + $0x4] sm:$0xf]
        %v1637 = vld [vmem:[%s9 + $0x8] sm:$0xf]
        %v1638 = vld [vmem:[%s9 + $0xc] sm:$0xf]
        %v1639 = vld [vmem:[%s9 + $0x10] sm:$0xf]
        %v1640 = vld [vmem:[%s9 + $0x14] sm:$0xf]
        %v1641 = vld [vmem:[%s9 + $0x18] sm:$0xf]
        %v1642 = vld [vmem:[%s9 + $0x1c] sm:$0xf]
        %v1643 = vld [vmem:[%s9 + $0x20] sm:$0xf]
        %v1644 = vld [vmem:[%s9 + $0x24] sm:$0xf]
        %v1645 = vld [vmem:[%s9 + $0x28] sm:$0xf]
        %v1646 = vld [vmem:[%s9 + $0x2c] sm:$0xf]
        %v1647 = vld [vmem:[%s10] sm:$0x1]
        %v1648 = vpack.c.bf16 %v1620, %v1619
        %v1649 = vpack.c.bf16 %v1622, %v1621
        %v1650 = vpack.c.bf16 %v1624, %v1623
        %v1651 = vpack.c.bf16 %v1626, %v1625
        %v1652 = vpack.c.bf16 %v1628, %v1627
        %v1653 = vpack.c.bf16 %v1630, %v1629
        %v1654 = vpack.c.bf16 %v1632, %v1631
        %v1655 = vpack.c.bf16 %v1634, %v1633
        %v1657 = vlaneseq
        %v1658 = vshrl.u32 %v1657, 7
        %v1659 = vsub.s32 0, %v1658
        %v1660 = vrot.slane %v1647, %v1659
        %v1674 = vunpack.c.l.b16 %v1635
        %v1675 = vunpack.c.l.b16 %v1636
        %v1676 = vunpack.c.l.b16 %v1637
        %v1677 = vunpack.c.l.b16 %v1638
        %v1678 = vunpack.c.l.b16 %v1639
        %v1679 = vunpack.c.l.b16 %v1640
        %v1680 = vunpack.c.l.b16 %v1641
        %v1681 = vunpack.c.l.b16 %v1642
        %v1682 = vunpack.c.l.b16 %v1643
        %v1683 = vunpack.c.l.b16 %v1644
        %v1684 = vunpack.c.l.b16 %v1645
        %v1685 = vunpack.c.l.b16 %v1646
        %v1686 = vpack.c.b16 %v1675, %v1674
        %v1687 = vpack.c.b16 %v1677, %v1676
        %v1688 = vpack.c.b16 %v1679, %v1678
        %v1689 = vpack.c.b16 %v1681, %v1680
        %v1690 = vpack.c.b16 %v1683, %v1682
        %v1691 = vpack.c.b16 %v1685, %v1684
        %vm1698 = vcmask 785408
        %v1700 = vsel %vm1698, %v1648, 0
        %v1703 = vsel %vm1698, %v1649, 0
        %v1706 = vsel %vm1698, %v1650, 0
        %v1709 = vsel %vm1698, %v1651, 0
        %v1712 = vsel %vm1698, %v1652, 0
        %v1715 = vsel %vm1698, %v1653, 0
        %v1718 = vsel %vm1698, %v1654, 0
        %v1721 = vsel %vm1698, %v1655, 0
        %1723 = vmatprep.subr.bf16.mxu0 0
        %1724 = vmatpush1.bf16.msra.mxu0 %v1686
        %1725 = vmatprep.subr.bf16.mxu0 0
        %1726 = vmatpush1.bf16.msra.mxu0 %v1687
        %1727 = vmatprep.subr.bf16.mxu0 0
        %1728 = vmatpush1.bf16.msra.mxu0 %v1688
        %1729 = vmatprep.subr.bf16.mxu0 0
        %1730 = vmatpush1.bf16.msra.mxu0 %v1689
        %1731 = vmatprep.subr.bf16.mxu0 0
        %1732 = vmatpush1.bf16.msra.mxu0 %v1690
        %1733 = vmatprep.subr.bf16.mxu0 0
        %1734 = vmatpush1.bf16.msra.mxu0 %v1691
        %1735 = vmatprep.subr.bf16.mxu0 0
        %1736 = vmatpush1.bf16.msra.mxu0 0
        %1737 = vmatprep.subr.bf16.mxu0 0
        %1738 = vmatpush1.bf16.msra.mxu0 0
        %1739 = vmatprep.subr.bf16.mxu0 0
        %1740 = vmatpush1.bf16.msra.mxu0 0
        %1741 = vmatprep.subr.bf16.mxu0 0
        %1742 = vmatpush1.bf16.msra.mxu0 0
        %1743 = vmatprep.subr.bf16.mxu0 0
        %1744 = vmatpush1.bf16.msra.mxu0 0
        %1745 = vmatprep.subr.bf16.mxu0 0
        %1746 = vmatpush1.bf16.msra.mxu0 0
        %1747 = vmatprep.subr.bf16.mxu0 0
        %1748 = vmatpush1.bf16.msra.mxu0 0
        %1749 = vmatprep.subr.bf16.mxu0 0
        %1750 = vmatpush1.bf16.msra.mxu0 0
        %1751 = vmatprep.subr.bf16.mxu0 0
        %1752 = vmatpush1.bf16.msra.mxu0 0
        %1753 = vmatprep.subr.bf16.mxu0 0
        %1754 = vmatpush1.bf16.msra.mxu0 0
        %1755 = vmatprep.mubr.bf16.mxu0 0
        %1756 = vmatmul.mubr.bf16.gmra.mrb[0].mxu0 %v1700
        %v1757 = vpop.f32.mrb[0].mxu0
        %v1758 = vadd.f32 %v1660, %v1757
        %v1759 = vpop.f32.mrb[0].mxu0
        %v1760 = vpop.f32.mrb[0].mxu0
        %v1761 = vadd.f32 %v1660, %v1760
        %v1762 = vpop.f32.mrb[0].mxu0
        %1763 = vmatprep.mubr.bf16.mxu0 0
        %1764 = vmatmul.mubr.bf16.gmra.mrb[0].mxu0 %v1703
        %v1765 = vpop.f32.mrb[0].mxu0
        %v1766 = vadd.f32 %v1660, %v1765
        %v1767 = vpop.f32.mrb[0].mxu0
        %v1768 = vpop.f32.mrb[0].mxu0
        %v1769 = vadd.f32 %v1660, %v1768
        %v1770 = vpop.f32.mrb[0].mxu0
        %1771 = vmatprep.mubr.bf16.mxu0 0
        %1772 = vmatmul.mubr.bf16.gmra.mrb[0].mxu0 %v1706
        %v1773 = vpop.f32.mrb[0].mxu0
        %v1774 = vadd.f32 %v1660, %v1773
        %v1775 = vpop.f32.mrb[0].mxu0
        %v1776 = vpop.f32.mrb[0].mxu0
        %v1777 = vadd.f32 %v1660, %v1776
        %v1778 = vpop.f32.mrb[0].mxu0
        %1779 = vmatprep.mubr.bf16.mxu0 0
        %1780 = vmatmul.mubr.bf16.gmra.mrb[0].mxu0 %v1709
        %v1781 = vpop.f32.mrb[0].mxu0
        %v1782 = vadd.f32 %v1660, %v1781
        %v1783 = vpop.f32.mrb[0].mxu0
        %v1784 = vpop.f32.mrb[0].mxu0
        %v1785 = vadd.f32 %v1660, %v1784
        %v1786 = vpop.f32.mrb[0].mxu0
        %1787 = vmatprep.mubr.bf16.mxu0 0
        %1788 = vmatmul.mubr.bf16.gmra.mrb[0].mxu0 %v1712
        %v1789 = vpop.f32.mrb[0].mxu0
        %v1790 = vadd.f32 %v1660, %v1789
        %v1791 = vpop.f32.mrb[0].mxu0
        %v1792 = vpop.f32.mrb[0].mxu0
        %v1793 = vadd.f32 %v1660, %v1792
        %v1794 = vpop.f32.mrb[0].mxu0
        %1795 = vmatprep.mubr.bf16.mxu0 0
        %1796 = vmatmul.mubr.bf16.gmra.mrb[0].mxu0 %v1715
        %v1797 = vpop.f32.mrb[0].mxu0
        %v1798 = vadd.f32 %v1660, %v1797
        %v1799 = vpop.f32.mrb[0].mxu0
        %v1800 = vpop.f32.mrb[0].mxu0
        %v1801 = vadd.f32 %v1660, %v1800
        %v1802 = vpop.f32.mrb[0].mxu0
        %1803 = vmatprep.mubr.bf16.mxu0 0
        %1804 = vmatmul.mubr.bf16.gmra.mrb[0].mxu0 %v1718
        %v1805 = vpop.f32.mrb[0].mxu0
        %v1806 = vadd.f32 %v1660, %v1805
        %v1807 = vpop.f32.mrb[0].mxu0
        %v1808 = vpop.f32.mrb[0].mxu0
        %v1809 = vadd.f32 %v1660, %v1808
        %v1810 = vpop.f32.mrb[0].mxu0
        %1811 = vmatprep.mubr.bf16.mxu0 0
        %1812 = vmatmul.mubr.bf16.gmra.mrb[0].mxu0 %v1721
        %v1813 = vpop.f32.mrb[0].mxu0
        %v1814 = vadd.f32 %v1660, %v1813
        %v1815 = vpop.f32.mrb[0].mxu0
        %v1816 = vpop.f32.mrb[0].mxu0
        %v1817 = vadd.f32 %v1660, %v1816
        %v1818 = vpop.f32.mrb[0].mxu0
        %1819 = vdwg.mxu0
        %v1820 = vmax.f32 %v1758, 0.0
        %v1821 = vmax.f32 %v1761, 0.0
        %v1822 = vmax.f32 %v1766, 0.0
        %v1823 = vmax.f32 %v1769, 0.0
        %v1824 = vmax.f32 %v1774, 0.0
        %v1825 = vmax.f32 %v1777, 0.0
        %v1826 = vmax.f32 %v1782, 0.0
        %v1827 = vmax.f32 %v1785, 0.0
        %v1828 = vmax.f32 %v1790, 0.0
        %v1829 = vmax.f32 %v1793, 0.0
        %v1830 = vmax.f32 %v1798, 0.0
        %v1831 = vmax.f32 %v1801, 0.0
        %v1832 = vmax.f32 %v1806, 0.0
        %v1833 = vmax.f32 %v1809, 0.0
        %v1834 = vmax.f32 %v1814, 0.0
        %v1835 = vmax.f32 %v1817, 0.0
        %v1836 = vld [vmem:[%s11] sm:$0xf]
        %v1837 = vld [vmem:[%s11 + $0x4] sm:$0xf]
        %v1838 = vld [vmem:[%s11 + $0x8] sm:$0xf]
        %v1839 = vld [vmem:[%s11 + $0xc] sm:$0xf]
        %v1840 = vld [vmem:[%s12] sm:$0x1]
        %v1841 = vpack.c.bf16 %v1821, %v1820
        %v1842 = vpack.c.bf16 %v1823, %v1822
        %v1843 = vpack.c.bf16 %v1825, %v1824
        %v1844 = vpack.c.bf16 %v1827, %v1826
        %v1845 = vpack.c.bf16 %v1829, %v1828
        %v1846 = vpack.c.bf16 %v1831, %v1830
        %v1847 = vpack.c.bf16 %v1833, %v1832
        %v1848 = vpack.c.bf16 %v1835, %v1834
        %v1850 = vlaneseq
        %v1851 = vshrl.u32 %v1850, 7
        %v1852 = vsub.s32 0, %v1851
        %v1853 = vrot.slane %v1840, %v1852
        %v1859 = vunpack.c.l.b16 %v1836
        %v1860 = vunpack.c.l.b16 %v1837
        %v1861 = vunpack.c.l.b16 %v1838
        %v1862 = vunpack.c.l.b16 %v1839
        %v1863 = vpack.c.b16 %v1860, %v1859
        %v1864 = vpack.c.b16 %v1862, %v1861
        %v1868 = vsel %vm588, %v1841, 0
        %v1871 = vsel %vm588, %v1842, 0
        %v1874 = vsel %vm588, %v1843, 0
        %v1877 = vsel %vm588, %v1844, 0
        %v1880 = vsel %vm588, %v1845, 0
        %v1883 = vsel %vm588, %v1846, 0
        %v1886 = vsel %vm588, %v1847, 0
        %v1889 = vsel %vm588, %v1848, 0
        %1891 = vmatprep.subr.bf16.mxu0 0
        %1892 = vmatpush1.bf16.msra.mxu0 %v1863
        %1893 = vmatprep.subr.bf16.mxu0 0
        %1894 = vmatpush1.bf16.msra.mxu0 %v1864
        %1895 = vmatprep.subr.bf16.mxu0 0
        %1896 = vmatpush1.bf16.msra.mxu0 0
        %1897 = vmatprep.subr.bf16.mxu0 0
        %1898 = vmatpush1.bf16.msra.mxu0 0
        %1899 = vmatprep.subr.bf16.mxu0 0
        %1900 = vmatpush1.bf16.msra.mxu0 0
        %1901 = vmatprep.subr.bf16.mxu0 0
        %1902 = vmatpush1.bf16.msra.mxu0 0
        %1903 = vmatprep.subr.bf16.mxu0 0
        %1904 = vmatpush1.bf16.msra.mxu0 0
        %1905 = vmatprep.subr.bf16.mxu0 0
        %1906 = vmatpush1.bf16.msra.mxu0 0
        %1907 = vmatprep.subr.bf16.mxu0 0
        %1908 = vmatpush1.bf16.msra.mxu0 0
        %1909 = vmatprep.subr.bf16.mxu0 0
        %1910 = vmatpush1.bf16.msra.mxu0 0
        %1911 = vmatprep.subr.bf16.mxu0 0
        %1912 = vmatpush1.bf16.msra.mxu0 0
        %1913 = vmatprep.subr.bf16.mxu0 0
        %1914 = vmatpush1.bf16.msra.mxu0 0
        %1915 = vmatprep.subr.bf16.mxu0 0
        %1916 = vmatpush1.bf16.msra.mxu0 0
        %1917 = vmatprep.subr.bf16.mxu0 0
        %1918 = vmatpush1.bf16.msra.mxu0 0
        %1919 = vmatprep.subr.bf16.mxu0 0
        %1920 = vmatpush1.bf16.msra.mxu0 0
        %1921 = vmatprep.subr.bf16.mxu0 0
        %1922 = vmatpush1.bf16.msra.mxu0 0
        %1923 = vmatprep.mubr.bf16.mxu0 0
        %1924 = vmatmul.mubr.bf16.gmra.mrb[0].mxu0 %v1868
        %v1925 = vpop.f32.mrb[0].mxu0
        %v1926 = vadd.f32 %v1853, %v1925
        %v1927 = vpop.f32.mrb[0].mxu0
        %v1928 = vpop.f32.mrb[0].mxu0
        %v1929 = vadd.f32 %v1853, %v1928
        %v1930 = vpop.f32.mrb[0].mxu0
        %1931 = vmatprep.mubr.bf16.mxu0 0
        %1932 = vmatmul.mubr.bf16.gmra.mrb[0].mxu0 %v1871
        %v1933 = vpop.f32.mrb[0].mxu0
        %v1934 = vadd.f32 %v1853, %v1933
        %v1935 = vpop.f32.mrb[0].mxu0
        %v1936 = vpop.f32.mrb[0].mxu0
        %v1937 = vadd.f32 %v1853, %v1936
        %v1938 = vpop.f32.mrb[0].mxu0
        %1939 = vmatprep.mubr.bf16.mxu0 0
        %1940 = vmatmul.mubr.bf16.gmra.mrb[0].mxu0 %v1874
        %v1941 = vpop.f32.mrb[0].mxu0
        %v1942 = vadd.f32 %v1853, %v1941
        %v1943 = vpop.f32.mrb[0].mxu0
        %v1944 = vpop.f32.mrb[0].mxu0
        %v1945 = vadd.f32 %v1853, %v1944
        %v1946 = vpop.f32.mrb[0].mxu0
        %1947 = vmatprep.mubr.bf16.mxu0 0
        %1948 = vmatmul.mubr.bf16.gmra.mrb[0].mxu0 %v1877
        %v1949 = vpop.f32.mrb[0].mxu0
        %v1950 = vadd.f32 %v1853, %v1949
        %v1951 = vpop.f32.mrb[0].mxu0
        %v1952 = vpop.f32.mrb[0].mxu0
        %v1953 = vadd.f32 %v1853, %v1952
        %v1954 = vpop.f32.mrb[0].mxu0
        %1955 = vmatprep.mubr.bf16.mxu0 0
        %1956 = vmatmul.mubr.bf16.gmra.mrb[0].mxu0 %v1880
        %v1957 = vpop.f32.mrb[0].mxu0
        %v1958 = vadd.f32 %v1853, %v1957
        %v1959 = vpop.f32.mrb[0].mxu0
        %v1960 = vpop.f32.mrb[0].mxu0
        %v1961 = vadd.f32 %v1853, %v1960
        %v1962 = vpop.f32.mrb[0].mxu0
        %1963 = vmatprep.mubr.bf16.mxu0 0
        %1964 = vmatmul.mubr.bf16.gmra.mrb[0].mxu0 %v1883
        %v1965 = vpop.f32.mrb[0].mxu0
        %v1966 = vadd.f32 %v1853, %v1965
        %v1967 = vpop.f32.mrb[0].mxu0
        %v1968 = vpop.f32.mrb[0].mxu0
        %v1969 = vadd.f32 %v1853, %v1968
        %v1970 = vpop.f32.mrb[0].mxu0
        %1971 = vmatprep.mubr.bf16.mxu0 0
        %1972 = vmatmul.mubr.bf16.gmra.mrb[0].mxu0 %v1886
        %v1973 = vpop.f32.mrb[0].mxu0
        %v1974 = vadd.f32 %v1853, %v1973
        %v1975 = vpop.f32.mrb[0].mxu0
        %v1976 = vpop.f32.mrb[0].mxu0
        %v1977 = vadd.f32 %v1853, %v1976
        %v1978 = vpop.f32.mrb[0].mxu0
        %1979 = vmatprep.mubr.bf16.mxu0 0
        %1980 = vmatmul.mubr.bf16.gmra.mrb[0].mxu0 %v1889
        %v1981 = vpop.f32.mrb[0].mxu0
        %v1982 = vadd.f32 %v1853, %v1981
        %v1983 = vpop.f32.mrb[0].mxu0
        %v1984 = vpop.f32.mrb[0].mxu0
        %v1985 = vadd.f32 %v1853, %v1984
        %v1986 = vpop.f32.mrb[0].mxu0
        %1987 = vdwg.mxu0
        %v1988 = vmax.f32 %v1926, 0.0
        %v1989 = vmax.f32 %v1929, 0.0
        %v1990 = vmax.f32 %v1934, 0.0
        %v1991 = vmax.f32 %v1937, 0.0
        %v1992 = vmax.f32 %v1942, 0.0
        %v1993 = vmax.f32 %v1945, 0.0
        %v1994 = vmax.f32 %v1950, 0.0
        %v1995 = vmax.f32 %v1953, 0.0
        %v1996 = vmax.f32 %v1958, 0.0
        %v1997 = vmax.f32 %v1961, 0.0
        %v1998 = vmax.f32 %v1966, 0.0
        %v1999 = vmax.f32 %v1969, 0.0
        %v2000 = vmax.f32 %v1974, 0.0
        %v2001 = vmax.f32 %v1977, 0.0
        %v2002 = vmax.f32 %v1982, 0.0
        %v2003 = vmax.f32 %v1985, 0.0
        %v2004 = vld [vmem:[%s13] sm:$0x1]
        %v2005 = vld [vmem:[%s14] sm:$0x3]
        %v2006 = vpack.c.bf16 %v1989, %v1988
        %v2007 = vpack.c.bf16 %v1991, %v1990
        %v2008 = vpack.c.bf16 %v1993, %v1992
        %v2009 = vpack.c.bf16 %v1995, %v1994
        %v2010 = vpack.c.bf16 %v1997, %v1996
        %v2011 = vpack.c.bf16 %v1999, %v1998
        %v2012 = vpack.c.bf16 %v2001, %v2000
        %v2013 = vpack.c.bf16 %v2003, %v2002
        %2015 = vset.pattern.permute.xlu0 0
        %2016 = vperm.xlu0 %2015, %v2005
        %v2017 = vpop.permute.xlu0 %2016
        %vm2019 = vcmask 130048
        %v2021 = vsel %vm2019, %v2004, 0
        %v2024 = vsel %vm2019, %v2006, 0
        %v2027 = vsel %vm2019, %v2007, 0
        %v2030 = vsel %vm2019, %v2008, 0
        %v2033 = vsel %vm2019, %v2009, 0
        %v2036 = vsel %vm2019, %v2010, 0
        %v2039 = vsel %vm2019, %v2011, 0
        %v2042 = vsel %vm2019, %v2012, 0
        %v2045 = vsel %vm2019, %v2013, 0
        %2047 = vmatprep.subr.bf16.mxu0 0
        %2048 = vmatpush1.bf16.xpose.msra.mxu0 %v2024
        %2049 = vmatprep.subr.bf16.mxu0 0
        %2050 = vmatpush1.bf16.xpose.msra.mxu0 %v2027
        %2051 = vmatprep.subr.bf16.mxu0 0
        %2052 = vmatpush1.bf16.xpose.msra.mxu0 %v2030
        %2053 = vmatprep.subr.bf16.mxu0 0
        %2054 = vmatpush1.bf16.xpose.msra.mxu0 %v2033
        %2055 = vmatprep.subr.bf16.mxu0 0
        %2056 = vmatpush1.bf16.xpose.msra.mxu0 %v2036
        %2057 = vmatprep.subr.bf16.mxu0 0
        %2058 = vmatpush1.bf16.xpose.msra.mxu0 %v2039
        %2059 = vmatprep.subr.bf16.mxu0 0
        %2060 = vmatpush1.bf16.xpose.msra.mxu0 %v2042
        %2061 = vmatprep.subr.bf16.mxu0 0
        %2062 = vmatpush1.bf16.xpose.msra.mxu0 %v2045
        %2063 = vmatprep.subr.bf16.mxu0 0
        %2064 = vmatpush1.bf16.xpose.msra.mxu0 0
        %2065 = vmatprep.subr.bf16.mxu0 0
        %2066 = vmatpush1.bf16.xpose.msra.mxu0 0
        %2067 = vmatprep.subr.bf16.mxu0 0
        %2068 = vmatpush1.bf16.xpose.msra.mxu0 0
        %2069 = vmatprep.subr.bf16.mxu0 0
        %2070 = vmatpush1.bf16.xpose.msra.mxu0 0
        %2071 = vmatprep.subr.bf16.mxu0 0
        %2072 = vmatpush1.bf16.xpose.msra.mxu0 0
        %2073 = vmatprep.subr.bf16.mxu0 0
        %2074 = vmatpush1.bf16.xpose.msra.mxu0 0
        %2075 = vmatprep.subr.bf16.mxu0 0
        %2076 = vmatpush1.bf16.xpose.msra.mxu0 0
        %2077 = vmatprep.subr.bf16.mxu0 0
        %2078 = vmatpush1.bf16.xpose.msra.mxu0 0
        %2079 = vmatprep.mubr.bf16.mxu0 0
        %2080 = vmatmul.mubr.bf16.gmra.mrb[0].mxu0 %v2021
        %v2081 = vpop.f32.mrb[0].mxu0
        %v2082 = vadd.f32 %v2017, %v2081
        %v2083 = vpop.f32.mrb[0].mxu0
        %v2084 = vpop.f32.mrb[0].mxu0
        %v2085 = vpop.f32.mrb[0].mxu0
        %2086 = vdwg.mxu0
        %v2087 = vxor.u32 %v2082, 2147483648
        %v2088 = vmul.f32 %v2087, 1.442695
        %v2089 = vpow.pop %v2088
        %v2090 = vadd.f32 %v2089, 1.0
        %v2091 = vrcp.pop %v2090
        %v2092 = vmul.f32 1.0, %v2091
        %2093 = vst [vmem:[%s488] sm:$0x3] %v2092
        %s2094 = sand.u32 %s357, 1
        %s2095 = scalar_lea.sflag [#allocation3], %s2094
        %s2096 = sand.u32 %s357, 1
        %s2097 = smul.addr %s2096, 2
        %s2098 = scalar_lea.vmem [#allocation2], %s2097
        // Predicated region
        $region81: #{tpu_custom_call.1} parent=79 // pred_check
          %p2099 = pneg %p367
        $region82: #{tpu_custom_call.1} parent=79 // pred_check_branch
          %2101 = sbr.rel (%p2099) target = $region84
        $region83: #{tpu_custom_call.1} parent=79 // pred_region
          %s2103 = ssub.s32 32, 32
          %2104 = vsyncadd %s2095, %s2103
          %s2105 = smul.addr %s29, 32
          %s2106 = scalar_lea.hbm %s15, %s2105
          %s2108 = sshll.u32 %s2098, 4
          %s2109 = int_to_ptr.vmem [resolvable:$true] %s2108
          %2111 = dma.vmem_to_hbm [thread:$0]  %s2109, 32, %s2106, %s2095
        $region84: #{tpu_custom_call.1} parent=79 // pred_fallthru
          _
      $region80: #{tpu_custom_call.1} parent=5 // pred_fallthru
        _
      %p2112 = scmp.le.s32.totalorder 2, %s24
      // Predicated region
      $region85: #{tpu_custom_call.1} parent=5 // pred_check
        %p2113 = pneg %p2112
      $region86: #{tpu_custom_call.1} parent=5 // pred_check_branch
        %2115 = sbr.rel (%p2113) target = $region88
      $region87: #{tpu_custom_call.1} parent=5 // pred_region
        %s2116 = ssub.s32 %s24, 2
        // Predicated region
        $region89: #{tpu_custom_call.1} parent=87 // pred_check
          %p2117 = pneg %p373
        $region90: #{tpu_custom_call.1} parent=87 // pred_check_branch
          %2119 = sbr.rel (%p2117) target = $region92
        $region91: #{tpu_custom_call.1} parent=87 // pred_region
          %s2120 = sand.u32 %s358, 1
          %s2121 = scalar_lea.sflag [#allocation3], %s2120
          %s2122 = sand.u32 %s358, 1
          %s2123 = smul.addr %s2122, 2
          %s2124 = scalar_lea.vmem [#allocation2], %s2123
          %2125 = dma.done %s2121, 32
        $region92: #{tpu_custom_call.1} parent=87 // pred_fallthru
          _
      $region88: #{tpu_custom_call.1} parent=5 // pred_fallthru
        _
    $region6: #{tpu_custom_call.1} parent=1 // loop_footer
      %s28 = sadd.s32 1, %s24
    $region7: #{tpu_custom_call.1} parent=1 // loop_footer_branch
      %23 = sbr.rel target = $region3
    $region8: #{tpu_custom_call.1} parent=1 // loop_exit
      _
    %2126 = vsyncpa [#allocation3], 1
    %s2127 = scalar_lea.sflag [#allocation3], 1
    %2128 = vsyncpa %s2127, 1

</llo_original>
